<compile_context>
chip_gen: v7x
topology: tpu7x:2x2x1
jax: 0.10.0
libtpu: 0.0.40
codegen_flags: <defaults>
</compile_context>

<pallas_src>
import math
import functools

import jax
import jax.numpy as jnp
import numpy as np
from jax import lax
from jax.experimental import pallas as pl
from jax.experimental.pallas import tpu as pltpu


def _recip(x):
    """Reciprocal via the EUP's approximate vrcp plus one Newton-Raphson step:
    ~full f32 accuracy while the initial estimate uses the EUP slot instead of
    competing for VALU slots with the S^2-scale softmax elementwise work."""
    r = pl.reciprocal(x, approx=True)
    return r * (2.0 - x * r)


def _pick_group_size(num_heads, head_size, lane_target=128, mxu_n_target=256):
    """Smallest head-group size G dividing H such that the context block is
    lane-dense (G*d >= 128) and the fused projection fills the MXU N dimension
    (3*G*d >= 256); falls back to all heads for small models."""
    for g in range(1, num_heads + 1):
        if (num_heads % g == 0 and g * head_size >= lane_target
                and 3 * g * head_size >= mxu_n_target):
            return g
    return num_heads


def _pick_row_tile(seq_len, target=512):
    """Key-row tile Tr: full S for small sequences, otherwise a 128..512-row
    tile so per-step probs blocks are O(Tr*S), not O(S*S) (v7x: 64 MiB VMEM)."""
    if seq_len <= target:
        return seq_len
    for tr in (512, 256, 128):
        if seq_len % tr == 0:
            return tr
    return seq_len


def pack_wiener_qkv_params(wq, wk, wv, bq, bk, bv, *, num_heads, group_size):
    """One-time parameter preparation (hoist out of the per-forward path).

    Returns:
      w_fused: (H//G, HIDDEN, 3*G*d)  per-group [Q | K | V] weight slab
      b_fused: (H//G, 1, 3*G*d)       per-group fused bias
    """
    HIDDEN = wq.shape[0]
    H, G = num_heads, group_size
    d = HIDDEN // H
    HG = H // G

    def pack_w(w):                                   # (HIDDEN, HIDDEN)
        return w.reshape(HIDDEN, HG, G * d)          # heads are column-major

    def pack_b(b):
        return jnp.asarray(b).reshape(HG, 1, G * d)

    w_fused = jnp.concatenate([pack_w(wq), pack_w(wk), pack_w(wv)],
                              axis=-1).transpose(1, 0, 2)      # (HG, HIDDEN, 3Gd)
    b_fused = jnp.concatenate([pack_b(bq), pack_b(bk), pack_b(bv)],
                              axis=-1)                         # (HG, 1, 3Gd)
    return w_fused, b_fused


def _wiener_attention_kernel(x_ref, w_ref, b_ref, ctx_ref, *rest,
                             group_size, head_size, gamma, row_tile,
                             mxu_dtype, with_probs):
    """One (batch, head-group, key-row-tile) block per grid step.

    Refs (size-1 leading block dims squeezed away):
      x_ref     (S, HIDDEN)         activations of this batch element
      w_ref     (HIDDEN, 3*G*d)     fused [Q | K | V] weight slab of the group
      b_ref     (1, 3*G*d)          fused bias
      ctx_ref   (Tr, G*d)           context rows, lands directly in (B,S,HIDDEN)
      probs_ref (G, Tr, S)          attention probabilities (optional)
      qkv_ref   (S, 3*G*d) f32      VMEM scratch: full-S fused projection
    """
    if with_probs:
        probs_ref, qkv_ref = rest
    else:
        (qkv_ref,) = rest

    G, d, Tr = group_size, head_size, row_tile
    Gd = G * d
    neg_inv_sqrt_d = -1.0 / math.sqrt(d)
    t = pl.program_id(2)

    # Fused full-S QKV projection: one MXU pass with N = 3*G*d, computed once
    # per (batch, head-group) and reused across the row tiles (row-tile axis is
    # innermost and "arbitrary").
    @pl.when(t == 0)
    def _():
        qkv_ref[...] = (jnp.dot(x_ref[...], w_ref[...],
                                preferred_element_type=jnp.float32)
                        + b_ref[...])

    row0 = pl.multiple_of(t * Tr, Tr)
    q_all = qkv_ref[:, pl.ds(0, Gd)]                    # (S,  Gd) queries
    v_all = qkv_ref[:, pl.ds(2 * Gd, Gd)]               # (S,  Gd) values
    k_til = qkv_ref[pl.ds(row0, Tr), pl.ds(Gd, Gd)]     # (Tr, Gd) key rows

    ctx_parts = []
    for g in range(G):                                  # small static unroll
        kg = k_til[:, g * d:(g + 1) * d]                # (Tr, d)
        qg = q_all[:, g * d:(g + 1) * d]                # (S,  d)
        vg = v_all[:, g * d:(g + 1) * d]                # (S,  d)

        # Wiener similarity with the -1/sqrt(d) scale folded into the K
        # operand: the MXU result is already the negated, scaled score matrix,
        # so no (Tr,S)-sized scale / negate passes are needed.
        kw = kg * _recip(kg * kg + gamma) * neg_inv_sqrt_d

        # Reference reshape quirk: scores[i, j] = sim(q_j, k_i).
        # Contract last-vs-last so no transposed copy of q is materialized.
        neg_scores = lax.dot_general(
            kw.astype(mxu_dtype), qg.astype(mxu_dtype),
            dimension_numbers=(((1,), (1,)), ((), ())),
            preferred_element_type=jnp.float32)          # (Tr, S)

        # softmin(scores) == softmax(-scores), numerically stabilized.
        m = jnp.max(neg_scores, axis=-1, keepdims=True)
        e = jnp.exp(neg_scores - m)
        p = e * _recip(jnp.sum(e, axis=-1, keepdims=True))

        if with_probs:
            probs_ref[g] = p.astype(probs_ref.dtype)

        ctx_parts.append(jnp.dot(p.astype(mxu_dtype), vg.astype(mxu_dtype),
                                 preferred_element_type=jnp.float32))

    # One lane-dense (Tr, G*d) store straight into the (B, S, HIDDEN) layout.
    ctx_ref[...] = jnp.concatenate(ctx_parts, axis=-1).astype(ctx_ref.dtype)


def wiener_self_attention(x, w_fused, b_fused, *, num_heads, group_size,
                          gamma=0.1, row_tile=None,
                          mxu_dtype=jnp.float32, probs_dtype=jnp.float32,
                          output_attentions=True, vmem_limit_bytes=None):
    """Forward pass.  Pass mxu_dtype=jnp.bfloat16 / probs_dtype=jnp.bfloat16
    or output_attentions=False for the fast (memory-bound-relieving) modes;
    f32 defaults hold the 1e-5 reference check."""
    B, S, HIDDEN = x.shape
    H, G = num_heads, group_size
    assert HIDDEN % H == 0 and H % G == 0
    d = HIDDEN // H
    Gd = G * d
    HG = H // G
    Tr = row_tile if row_tile is not None else _pick_row_tile(S)
    assert S % Tr == 0
    NT = S // Tr

    x_in = x.astype(mxu_dtype)
    w_in = w_fused.astype(mxu_dtype)
    b_in = b_fused.astype(jnp.float32)      # bias joins the f32 accumulator

    kernel = functools.partial(
        _wiener_attention_kernel, group_size=G, head_size=d, gamma=gamma,
        row_tile=Tr, mxu_dtype=mxu_dtype, with_probs=output_attentions)

    ctx_shape = jax.ShapeDtypeStruct((B, S, HIDDEN), jnp.float32)
    ctx_spec = pl.BlockSpec((pl.Squeezed(), Tr, Gd),
                            lambda b, hg, t: (b, t, hg))
    if output_attentions:
        out_shape = (ctx_shape,
                     jax.ShapeDtypeStruct((B, H, S, S), probs_dtype))
        out_specs = [ctx_spec,
                     pl.BlockSpec((pl.Squeezed(), G, Tr, S),
                                  lambda b, hg, t: (b, hg, t, 0))]
    else:
        out_shape = ctx_shape
        out_specs = ctx_spec

    grid_spec = pltpu.PrefetchScalarGridSpec(
        num_scalar_prefetch=0,
        grid=(B, HG, NT),
        in_specs=[
            # x: constant block index across (hg, t) -> fetched once per batch.
            pl.BlockSpec((pl.Squeezed(), S, HIDDEN), lambda b, hg, t: (b, 0, 0)),
            pl.BlockSpec((pl.Squeezed(), HIDDEN, 3 * Gd),
                         lambda b, hg, t: (hg, 0, 0)),
            pl.BlockSpec((pl.Squeezed(), 1, 3 * Gd),
                         lambda b, hg, t: (hg, 0, 0)),
        ],
        out_specs=out_specs,
        scratch_shapes=[pltpu.VMEM((S, 3 * Gd), jnp.float32)],
    )

    # Advisory roofline hint for XLA's scheduler around the custom call.
    flops = 6 * B * S * HIDDEN * HIDDEN + 4 * B * H * S * S * d
    transcendentals = B * H * S * S
    bytes_accessed = (x_in.size * x_in.dtype.itemsize
                      + w_in.size * w_in.dtype.itemsize
                      + B * S * HIDDEN * 4)
    if output_attentions:
        bytes_accessed += B * H * S * S * jnp.dtype(probs_dtype).itemsize

    return pl.pallas_call(
        kernel,
        out_shape=out_shape,
        grid_spec=grid_spec,
        compiler_params=pltpu.CompilerParams(
            dimension_semantics=("parallel", "parallel", "arbitrary"),
            vmem_limit_bytes=vmem_limit_bytes),
        cost_estimate=pl.CostEstimate(flops=flops,
                                      transcendentals=transcendentals,
                                      bytes_accessed=bytes_accessed),
    )(x_in, w_in, b_in)


def _reference(x, wq, wk, wv, bq, bk, bv, num_heads, gamma):
    """Pure-JAX re-implementation of the torch forward for verification."""
    B, S, HIDDEN = x.shape
    d = HIDDEN // num_heads
    q = x @ wq + bq
    k = x @ wk + bk
    v = x @ wv + bv

    def split(t):
        return t.reshape(B, S, num_heads, d).transpose(0, 2, 1, 3)

    Q, K, V = split(q), split(k), split(v)
    KW = K / (K * K + gamma)
    # scores[b,h,i,j] = sim(Q[b,h,j], K[b,h,i])  (reshape quirk of the reference)
    scores = jnp.einsum('bhid,bhjd->bhij', KW, Q) / math.sqrt(d)
    probs = jax.nn.softmax(-scores, axis=-1)                   # softmin
    ctx = jnp.einsum('bhij,bhjd->bhid', probs, V)
    ctx = ctx.transpose(0, 2, 1, 3).reshape(B, S, HIDDEN)
    return ctx, probs


if __name__ == "__main__":
    # config: hidden_size=32, num_attention_heads=4 -> head_size=8
    B, S, HIDDEN, H = 2, 8, 32, 4
    GAMMA = 0.1

    key = jax.random.PRNGKey(0)
    k_x, k_wq, k_wk, k_wv, k_bq, k_bk, k_bv = jax.random.split(key, 7)

    scale = 1.0 / math.sqrt(HIDDEN)
    x = jax.random.normal(k_x, (B, S, HIDDEN), dtype=jnp.float32)
    wq = jax.random.normal(k_wq, (HIDDEN, HIDDEN), dtype=jnp.float32) * scale
    wk = jax.random.normal(k_wk, (HIDDEN, HIDDEN), dtype=jnp.float32) * scale
    wv = jax.random.normal(k_wv, (HIDDEN, HIDDEN), dtype=jnp.float32) * scale
    bq = jax.random.normal(k_bq, (1, HIDDEN), dtype=jnp.float32) * scale
    bk = jax.random.normal(k_bk, (1, HIDDEN), dtype=jnp.float32) * scale
    bv = jax.random.normal(k_bv, (1, HIDDEN), dtype=jnp.float32) * scale

    d = HIDDEN // H
    G = _pick_group_size(H, d)          # whole-H group at this toy size

    # One-time parameter preparation (hoisted out of the per-forward wrapper).
    w_fused, b_fused = pack_wiener_qkv_params(wq, wk, wv, bq, bk, bv,
                                              num_heads=H, group_size=G)

    ctx, probs = wiener_self_attention(x, w_fused, b_fused, num_heads=H,
                                       group_size=G, gamma=GAMMA)
    jax.block_until_ready((ctx, probs))

    ctx_want, probs_want = _reference(x, wq, wk, wv, bq, bk, bv, H, GAMMA)
    np.testing.assert_allclose(np.asarray(ctx), np.asarray(ctx_want),
                               rtol=1e-5, atol=1e-5)
    np.testing.assert_allclose(np.asarray(probs), np.asarray(probs_want),
                               rtol=1e-5, atol=1e-5)

    # Fast path that skips materializing attention_probs (the dominant HBM term).
    ctx_only = wiener_self_attention(x, w_fused, b_fused, num_heads=H,
                                     group_size=G, gamma=GAMMA,
                                     output_attentions=False)
    jax.block_until_ready(ctx_only)
    np.testing.assert_allclose(np.asarray(ctx_only), np.asarray(ctx_want),
                               rtol=1e-5, atol=1e-5)

    print("KERNEL_OK")
</pallas_src>

<mosaic_0001>
module attributes {stable_mosaic.version = 11 : i64} {
  func.func @_wiener_attention_kernel(%arg0: i32, %arg1: i32, %arg2: i32, %arg3: memref<1x8x32xf32, #tpu.memory_space<vmem>>, %arg4: memref<1x32x96xf32, #tpu.memory_space<vmem>>, %arg5: memref<1x1x96xf32, #tpu.memory_space<vmem>>, %arg6: memref<1x8x32xf32, #tpu.memory_space<vmem>>, %arg7: memref<1x4x8x8xf32, #tpu.memory_space<vmem>>, %arg8: memref<8x96xf32, #tpu.memory_space<vmem>>) attributes {dimension_semantics = [#tpu.dimension_semantics<parallel>, #tpu.dimension_semantics<parallel>, #tpu.dimension_semantics<arbitrary>], iteration_bounds = array<i64: 2, 1, 1>, scalar_prefetch = 0 : i64, scratch_operands = 1 : i64, tpu.core_type = #tpu.core_type<tc>, window_params = [{transform_indices = @transform_0, window_bounds = array<i64: 1, 8, 32>}, {transform_indices = @transform_1, window_bounds = array<i64: 1, 32, 96>}, {transform_indices = @transform_2, window_bounds = array<i64: 1, 1, 96>}, {transform_indices = @transform_3, window_bounds = array<i64: 1, 8, 32>}, {transform_indices = @transform_4, window_bounds = array<i64: 1, 4, 8, 8>}]} {
    %c0_i32 = arith.constant 0 : i32
    %0 = arith.cmpi eq, %arg2, %c0_i32 : i32
    %1 = arith.extui %0 : i1 to i32
    %c0_i32_0 = arith.constant 0 : i32
    %2 = arith.cmpi ne, %1, %c0_i32_0 : i32
    scf.if %2 {
      %c0_50 = arith.constant 0 : index
      %c0_51 = arith.constant 0 : index
      %c0_52 = arith.constant 0 : index
      %145 = vector.load %arg3[%c0_50, %c0_51, %c0_52] : memref<1x8x32xf32, #tpu.memory_space<vmem>>, vector<1x8x32xf32>
      %146 = vector.shape_cast %145 : vector<1x8x32xf32> to vector<8x32xf32>
      %c0_53 = arith.constant 0 : index
      %c0_54 = arith.constant 0 : index
      %c0_55 = arith.constant 0 : index
      %147 = vector.load %arg4[%c0_53, %c0_54, %c0_55] : memref<1x32x96xf32, #tpu.memory_space<vmem>>, vector<1x32x96xf32>
      %148 = vector.shape_cast %147 : vector<1x32x96xf32> to vector<32x96xf32>
      %cst_56 = arith.constant dense<0.000000e+00> : vector<8x96xf32>
      %149 = tpu.matmul %146, %148, %cst_56 {dimension_numbers = #tpu.dot_dimension_numbers<[1], [0], [0], [1], [0, 0, 1, 1], [], []>} : vector<8x32xf32>, vector<32x96xf32>, vector<8x96xf32> -> vector<8x96xf32>
      %c0_57 = arith.constant 0 : index
      %c0_58 = arith.constant 0 : index
      %c0_59 = arith.constant 0 : index
      %150 = vector.load %arg5[%c0_57, %c0_58, %c0_59] : memref<1x1x96xf32, #tpu.memory_space<vmem>>, vector<1x1x96xf32>
      %151 = vector.shape_cast %150 : vector<1x1x96xf32> to vector<1x96xf32>
      %152 = vector.broadcast %151 : vector<1x96xf32> to vector<8x96xf32>
      %153 = arith.addf %149, %152 : vector<8x96xf32>
      %c0_60 = arith.constant 0 : index
      %c0_61 = arith.constant 0 : index
      %154 = vector.load %arg8[%c0_60, %c0_61] : memref<8x96xf32, #tpu.memory_space<vmem>>, vector<8x96xf32>
      tpu.vector_store %arg8[%c0_60, %c0_61], %153 {strides = array<i32>} : memref<8x96xf32, #tpu.memory_space<vmem>>, vector<8x96xf32>,
    } else {
    }
    %c8_i32 = arith.constant 8 : i32
    %3 = arith.muli %arg2, %c8_i32 : i32
    %4 = tpu.assume_multiple %3, 8 : i32
    %c0 = arith.constant 0 : index
    %c0_1 = arith.constant 0 : index
    %5 = vector.load %arg8[%c0, %c0_1] : memref<8x96xf32, #tpu.memory_space<vmem>>, vector<8x32xf32>
    %c0_2 = arith.constant 0 : index
    %c64 = arith.constant 64 : index
    %6 = vector.load %arg8[%c0_2, %c64] : memref<8x96xf32, #tpu.memory_space<vmem>>, vector<8x32xf32>
    %7 = arith.index_cast %4 : i32 to index
    %c32 = arith.constant 32 : index
    %8 = vector.load %arg8[%7, %c32] : memref<8x96xf32, #tpu.memory_space<vmem>>, vector<8x32xf32>
    %9 = vector.extract_strided_slice %8 {offsets = [0, 0], sizes = [8, 8], strides = [1, 1]} : vector<8x32xf32> to vector<8x8xf32>
    %10 = vector.extract_strided_slice %5 {offsets = [0, 0], sizes = [8, 8], strides = [1, 1]} : vector<8x32xf32> to vector<8x8xf32>
    %11 = vector.extract_strided_slice %6 {offsets = [0, 0], sizes = [8, 8], strides = [1, 1]} : vector<8x32xf32> to vector<8x8xf32>
    %12 = arith.mulf %9, %9 : vector<8x8xf32>
    %cst = arith.constant 1.000000e-01 : f32
    %13 = vector.broadcast %cst : f32 to vector<8x8xf32>
    %14 = arith.addf %12, %13 : vector<8x8xf32>
    %15 = tpu.reciprocal %14 {approx = true} : vector<8x8xf32> -> vector<8x8xf32>
    %16 = arith.mulf %14, %15 : vector<8x8xf32>
    %cst_3 = arith.constant 2.000000e+00 : f32
    %17 = vector.broadcast %cst_3 : f32 to vector<8x8xf32>
    %18 = arith.subf %17, %16 : vector<8x8xf32>
    %19 = arith.mulf %15, %18 : vector<8x8xf32>
    %20 = arith.mulf %9, %19 : vector<8x8xf32>
    %cst_4 = arith.constant -0.353553385 : f32
    %21 = vector.broadcast %cst_4 : f32 to vector<8x8xf32>
    %22 = arith.mulf %20, %21 : vector<8x8xf32>
    %cst_5 = arith.constant dense<0.000000e+00> : vector<8x8xf32>
    %23 = tpu.matmul %22, %10, %cst_5 {dimension_numbers = #tpu.dot_dimension_numbers<[1], [1], [0], [0], [0, 0, 1, 0], [], []>} : vector<8x8xf32>, vector<8x8xf32>, vector<8x8xf32> -> vector<8x8xf32>
    %cst_6 = arith.constant dense<0xFF800000> : vector<8xf32>
    %24 = vector.multi_reduction <maximumf>, %23, %cst_6 [1] : vector<8x8xf32> to vector<8xf32>
    %25 = vector.shape_cast %24 : vector<8xf32> to vector<8x1xf32>
    %26 = vector.broadcast %25 : vector<8x1xf32> to vector<8x8xf32>
    %27 = arith.subf %23, %26 : vector<8x8xf32>
    %28 = math.exp %27 : vector<8x8xf32>
    %cst_7 = arith.constant dense<0.000000e+00> : vector<8xf32>
    %29 = vector.multi_reduction <add>, %28, %cst_7 [1] : vector<8x8xf32> to vector<8xf32>
    %30 = vector.shape_cast %29 : vector<8xf32> to vector<8x1xf32>
    %31 = tpu.reciprocal %30 {approx = true} : vector<8x1xf32> -> vector<8x1xf32>
    %32 = arith.mulf %30, %31 : vector<8x1xf32>
    %cst_8 = arith.constant 2.000000e+00 : f32
    %33 = vector.broadcast %cst_8 : f32 to vector<8x1xf32>
    %34 = arith.subf %33, %32 : vector<8x1xf32>
    %35 = arith.mulf %31, %34 : vector<8x1xf32>
    %36 = vector.broadcast %35 : vector<8x1xf32> to vector<8x8xf32>
    %37 = arith.mulf %28, %36 : vector<8x8xf32>
    %c0_9 = arith.constant 0 : index
    %c0_10 = arith.constant 0 : index
    %c0_11 = arith.constant 0 : index
    %c0_12 = arith.constant 0 : index
    %38 = vector.load %arg7[%c0_9, %c0_10, %c0_11, %c0_12] : memref<1x4x8x8xf32, #tpu.memory_space<vmem>>, vector<1x1x8x8xf32>
    %39 = vector.shape_cast %38 : vector<1x1x8x8xf32> to vector<8x8xf32>
    %40 = vector.shape_cast %37 : vector<8x8xf32> to vector<1x1x8x8xf32>
    tpu.vector_store %arg7[%c0_9, %c0_10, %c0_11, %c0_12], %40 {strides = array<i32>} : memref<1x4x8x8xf32, #tpu.memory_space<vmem>>, vector<1x1x8x8xf32>,
    %cst_13 = arith.constant dense<0.000000e+00> : vector<8x8xf32>
    %41 = tpu.matmul %37, %11, %cst_13 {dimension_numbers = #tpu.dot_dimension_numbers<[1], [0], [0], [1], [0, 0, 1, 1], [], []>} : vector<8x8xf32>, vector<8x8xf32>, vector<8x8xf32> -> vector<8x8xf32>
    %42 = vector.extract_strided_slice %8 {offsets = [0, 8], sizes = [8, 8], strides = [1, 1]} : vector<8x32xf32> to vector<8x8xf32>
    %43 = vector.extract_strided_slice %5 {offsets = [0, 8], sizes = [8, 8], strides = [1, 1]} : vector<8x32xf32> to vector<8x8xf32>
    %44 = vector.extract_strided_slice %6 {offsets = [0, 8], sizes = [8, 8], strides = [1, 1]} : vector<8x32xf32> to vector<8x8xf32>
    %45 = arith.mulf %42, %42 : vector<8x8xf32>
    %cst_14 = arith.constant 1.000000e-01 : f32
    %46 = vector.broadcast %cst_14 : f32 to vector<8x8xf32>
    %47 = arith.addf %45, %46 : vector<8x8xf32>
    %48 = tpu.reciprocal %47 {approx = true} : vector<8x8xf32> -> vector<8x8xf32>
    %49 = arith.mulf %47, %48 : vector<8x8xf32>
    %cst_15 = arith.constant 2.000000e+00 : f32
    %50 = vector.broadcast %cst_15 : f32 to vector<8x8xf32>
    %51 = arith.subf %50, %49 : vector<8x8xf32>
    %52 = arith.mulf %48, %51 : vector<8x8xf32>
    %53 = arith.mulf %42, %52 : vector<8x8xf32>
    %cst_16 = arith.constant -0.353553385 : f32
    %54 = vector.broadcast %cst_16 : f32 to vector<8x8xf32>
    %55 = arith.mulf %53, %54 : vector<8x8xf32>
    %cst_17 = arith.constant dense<0.000000e+00> : vector<8x8xf32>
    %56 = tpu.matmul %55, %43, %cst_17 {dimension_numbers = #tpu.dot_dimension_numbers<[1], [1], [0], [0], [0, 0, 1, 0], [], []>} : vector<8x8xf32>, vector<8x8xf32>, vector<8x8xf32> -> vector<8x8xf32>
    %cst_18 = arith.constant dense<0xFF800000> : vector<8xf32>
    %57 = vector.multi_reduction <maximumf>, %56, %cst_18 [1] : vector<8x8xf32> to vector<8xf32>
    %58 = vector.shape_cast %57 : vector<8xf32> to vector<8x1xf32>
    %59 = vector.broadcast %58 : vector<8x1xf32> to vector<8x8xf32>
    %60 = arith.subf %56, %59 : vector<8x8xf32>
    %61 = math.exp %60 : vector<8x8xf32>
    %cst_19 = arith.constant dense<0.000000e+00> : vector<8xf32>
    %62 = vector.multi_reduction <add>, %61, %cst_19 [1] : vector<8x8xf32> to vector<8xf32>
    %63 = vector.shape_cast %62 : vector<8xf32> to vector<8x1xf32>
    %64 = tpu.reciprocal %63 {approx = true} : vector<8x1xf32> -> vector<8x1xf32>
    %65 = arith.mulf %63, %64 : vector<8x1xf32>
    %cst_20 = arith.constant 2.000000e+00 : f32
    %66 = vector.broadcast %cst_20 : f32 to vector<8x1xf32>
    %67 = arith.subf %66, %65 : vector<8x1xf32>
    %68 = arith.mulf %64, %67 : vector<8x1xf32>
    %69 = vector.broadcast %68 : vector<8x1xf32> to vector<8x8xf32>
    %70 = arith.mulf %61, %69 : vector<8x8xf32>
    %c0_21 = arith.constant 0 : index
    %c1 = arith.constant 1 : index
    %c0_22 = arith.constant 0 : index
    %c0_23 = arith.constant 0 : index
    %71 = vector.load %arg7[%c0_21, %c1, %c0_22, %c0_23] : memref<1x4x8x8xf32, #tpu.memory_space<vmem>>, vector<1x1x8x8xf32>
    %72 = vector.shape_cast %71 : vector<1x1x8x8xf32> to vector<8x8xf32>
    %73 = vector.shape_cast %70 : vector<8x8xf32> to vector<1x1x8x8xf32>
    tpu.vector_store %arg7[%c0_21, %c1, %c0_22, %c0_23], %73 {strides = array<i32>} : memref<1x4x8x8xf32, #tpu.memory_space<vmem>>, vector<1x1x8x8xf32>,
    %cst_24 = arith.constant dense<0.000000e+00> : vector<8x8xf32>
    %74 = tpu.matmul %70, %44, %cst_24 {dimension_numbers = #tpu.dot_dimension_numbers<[1], [0], [0], [1], [0, 0, 1, 1], [], []>} : vector<8x8xf32>, vector<8x8xf32>, vector<8x8xf32> -> vector<8x8xf32>
    %75 = vector.extract_strided_slice %8 {offsets = [0, 16], sizes = [8, 8], strides = [1, 1]} : vector<8x32xf32> to vector<8x8xf32>
    %76 = vector.extract_strided_slice %5 {offsets = [0, 16], sizes = [8, 8], strides = [1, 1]} : vector<8x32xf32> to vector<8x8xf32>
    %77 = vector.extract_strided_slice %6 {offsets = [0, 16], sizes = [8, 8], strides = [1, 1]} : vector<8x32xf32> to vector<8x8xf32>
    %78 = arith.mulf %75, %75 : vector<8x8xf32>
    %cst_25 = arith.constant 1.000000e-01 : f32
    %79 = vector.broadcast %cst_25 : f32 to vector<8x8xf32>
    %80 = arith.addf %78, %79 : vector<8x8xf32>
    %81 = tpu.reciprocal %80 {approx = true} : vector<8x8xf32> -> vector<8x8xf32>
    %82 = arith.mulf %80, %81 : vector<8x8xf32>
    %cst_26 = arith.constant 2.000000e+00 : f32
    %83 = vector.broadcast %cst_26 : f32 to vector<8x8xf32>
    %84 = arith.subf %83, %82 : vector<8x8xf32>
    %85 = arith.mulf %81, %84 : vector<8x8xf32>
    %86 = arith.mulf %75, %85 : vector<8x8xf32>
    %cst_27 = arith.constant -0.353553385 : f32
    %87 = vector.broadcast %cst_27 : f32 to vector<8x8xf32>
    %88 = arith.mulf %86, %87 : vector<8x8xf32>
    %cst_28 = arith.constant dense<0.000000e+00> : vector<8x8xf32>
    %89 = tpu.matmul %88, %76, %cst_28 {dimension_numbers = #tpu.dot_dimension_numbers<[1], [1], [0], [0], [0, 0, 1, 0], [], []>} : vector<8x8xf32>, vector<8x8xf32>, vector<8x8xf32> -> vector<8x8xf32>
    %cst_29 = arith.constant dense<0xFF800000> : vector<8xf32>
    %90 = vector.multi_reduction <maximumf>, %89, %cst_29 [1] : vector<8x8xf32> to vector<8xf32>
    %91 = vector.shape_cast %90 : vector<8xf32> to vector<8x1xf32>
    %92 = vector.broadcast %91 : vector<8x1xf32> to vector<8x8xf32>
    %93 = arith.subf %89, %92 : vector<8x8xf32>
    %94 = math.exp %93 : vector<8x8xf32>
    %cst_30 = arith.constant dense<0.000000e+00> : vector<8xf32>
    %95 = vector.multi_reduction <add>, %94, %cst_30 [1] : vector<8x8xf32> to vector<8xf32>
    %96 = vector.shape_cast %95 : vector<8xf32> to vector<8x1xf32>
    %97 = tpu.reciprocal %96 {approx = true} : vector<8x1xf32> -> vector<8x1xf32>
    %98 = arith.mulf %96, %97 : vector<8x1xf32>
    %cst_31 = arith.constant 2.000000e+00 : f32
    %99 = vector.broadcast %cst_31 : f32 to vector<8x1xf32>
    %100 = arith.subf %99, %98 : vector<8x1xf32>
    %101 = arith.mulf %97, %100 : vector<8x1xf32>
    %102 = vector.broadcast %101 : vector<8x1xf32> to vector<8x8xf32>
    %103 = arith.mulf %94, %102 : vector<8x8xf32>
    %c0_32 = arith.constant 0 : index
    %c2 = arith.constant 2 : index
    %c0_33 = arith.constant 0 : index
    %c0_34 = arith.constant 0 : index
    %104 = vector.load %arg7[%c0_32, %c2, %c0_33, %c0_34] : memref<1x4x8x8xf32, #tpu.memory_space<vmem>>, vector<1x1x8x8xf32>
    %105 = vector.shape_cast %104 : vector<1x1x8x8xf32> to vector<8x8xf32>
    %106 = vector.shape_cast %103 : vector<8x8xf32> to vector<1x1x8x8xf32>
    tpu.vector_store %arg7[%c0_32, %c2, %c0_33, %c0_34], %106 {strides = array<i32>} : memref<1x4x8x8xf32, #tpu.memory_space<vmem>>, vector<1x1x8x8xf32>,
    %cst_35 = arith.constant dense<0.000000e+00> : vector<8x8xf32>
    %107 = tpu.matmul %103, %77, %cst_35 {dimension_numbers = #tpu.dot_dimension_numbers<[1], [0], [0], [1], [0, 0, 1, 1], [], []>} : vector<8x8xf32>, vector<8x8xf32>, vector<8x8xf32> -> vector<8x8xf32>
    %108 = vector.extract_strided_slice %8 {offsets = [0, 24], sizes = [8, 8], strides = [1, 1]} : vector<8x32xf32> to vector<8x8xf32>
    %109 = vector.extract_strided_slice %5 {offsets = [0, 24], sizes = [8, 8], strides = [1, 1]} : vector<8x32xf32> to vector<8x8xf32>
    %110 = vector.extract_strided_slice %6 {offsets = [0, 24], sizes = [8, 8], strides = [1, 1]} : vector<8x32xf32> to vector<8x8xf32>
    %111 = arith.mulf %108, %108 : vector<8x8xf32>
    %cst_36 = arith.constant 1.000000e-01 : f32
    %112 = vector.broadcast %cst_36 : f32 to vector<8x8xf32>
    %113 = arith.addf %111, %112 : vector<8x8xf32>
    %114 = tpu.reciprocal %113 {approx = true} : vector<8x8xf32> -> vector<8x8xf32>
    %115 = arith.mulf %113, %114 : vector<8x8xf32>
    %cst_37 = arith.constant 2.000000e+00 : f32
    %116 = vector.broadcast %cst_37 : f32 to vector<8x8xf32>
    %117 = arith.subf %116, %115 : vector<8x8xf32>
    %118 = arith.mulf %114, %117 : vector<8x8xf32>
    %119 = arith.mulf %108, %118 : vector<8x8xf32>
    %cst_38 = arith.constant -0.353553385 : f32
    %120 = vector.broadcast %cst_38 : f32 to vector<8x8xf32>
    %121 = arith.mulf %119, %120 : vector<8x8xf32>
    %cst_39 = arith.constant dense<0.000000e+00> : vector<8x8xf32>
    %122 = tpu.matmul %121, %109, %cst_39 {dimension_numbers = #tpu.dot_dimension_numbers<[1], [1], [0], [0], [0, 0, 1, 0], [], []>} : vector<8x8xf32>, vector<8x8xf32>, vector<8x8xf32> -> vector<8x8xf32>
    %cst_40 = arith.constant dense<0xFF800000> : vector<8xf32>
    %123 = vector.multi_reduction <maximumf>, %122, %cst_40 [1] : vector<8x8xf32> to vector<8xf32>
    %124 = vector.shape_cast %123 : vector<8xf32> to vector<8x1xf32>
    %125 = vector.broadcast %124 : vector<8x1xf32> to vector<8x8xf32>
    %126 = arith.subf %122, %125 : vector<8x8xf32>
    %127 = math.exp %126 : vector<8x8xf32>
    %cst_41 = arith.constant dense<0.000000e+00> : vector<8xf32>
    %128 = vector.multi_reduction <add>, %127, %cst_41 [1] : vector<8x8xf32> to vector<8xf32>
    %129 = vector.shape_cast %128 : vector<8xf32> to vector<8x1xf32>
    %130 = tpu.reciprocal %129 {approx = true} : vector<8x1xf32> -> vector<8x1xf32>
    %131 = arith.mulf %129, %130 : vector<8x1xf32>
    %cst_42 = arith.constant 2.000000e+00 : f32
    %132 = vector.broadcast %cst_42 : f32 to vector<8x1xf32>
    %133 = arith.subf %132, %131 : vector<8x1xf32>
    %134 = arith.mulf %130, %133 : vector<8x1xf32>
    %135 = vector.broadcast %134 : vector<8x1xf32> to vector<8x8xf32>
    %136 = arith.mulf %127, %135 : vector<8x8xf32>
    %c0_43 = arith.constant 0 : index
    %c3 = arith.constant 3 : index
    %c0_44 = arith.constant 0 : index
    %c0_45 = arith.constant 0 : index
    %137 = vector.load %arg7[%c0_43, %c3, %c0_44, %c0_45] : memref<1x4x8x8xf32, #tpu.memory_space<vmem>>, vector<1x1x8x8xf32>
    %138 = vector.shape_cast %137 : vector<1x1x8x8xf32> to vector<8x8xf32>
    %139 = vector.shape_cast %136 : vector<8x8xf32> to vector<1x1x8x8xf32>
    tpu.vector_store %arg7[%c0_43, %c3, %c0_44, %c0_45], %139 {strides = array<i32>} : memref<1x4x8x8xf32, #tpu.memory_space<vmem>>, vector<1x1x8x8xf32>,
    %cst_46 = arith.constant dense<0.000000e+00> : vector<8x8xf32>
    %140 = tpu.matmul %136, %110, %cst_46 {dimension_numbers = #tpu.dot_dimension_numbers<[1], [0], [0], [1], [0, 0, 1, 1], [], []>} : vector<8x8xf32>, vector<8x8xf32>, vector<8x8xf32> -> vector<8x8xf32>
    %141 = tpu.concatenate %41, %74, %107, %140 in 1 : vector<8x8xf32>, vector<8x8xf32>, vector<8x8xf32>, vector<8x8xf32> -> vector<8x32xf32>
    %c0_47 = arith.constant 0 : index
    %c0_48 = arith.constant 0 : index
    %c0_49 = arith.constant 0 : index
    %142 = vector.load %arg6[%c0_47, %c0_48, %c0_49] : memref<1x8x32xf32, #tpu.memory_space<vmem>>, vector<1x8x32xf32>
    %143 = vector.shape_cast %142 : vector<1x8x32xf32> to vector<8x32xf32>
    %144 = vector.shape_cast %141 : vector<8x32xf32> to vector<1x8x32xf32>
    tpu.vector_store %arg6[%c0_47, %c0_48, %c0_49], %144 {strides = array<i32>} : memref<1x8x32xf32, #tpu.memory_space<vmem>>, vector<1x8x32xf32>,
    return
  }
  func.func @transform_0(%arg0: i32, %arg1: i32, %arg2: i32) -> (i32, i32, i32) {
    %c0_i32 = arith.constant 0 : i32
    %c0_i32_0 = arith.constant 0 : i32
    %c0_i32_1 = arith.constant 0 : i32
    return %arg0, %c0_i32, %c0_i32_0 : i32, i32, i32
  }
  func.func @transform_1(%arg0: i32, %arg1: i32, %arg2: i32) -> (i32, i32, i32) {
    %c0_i32 = arith.constant 0 : i32
    %c0_i32_0 = arith.constant 0 : i32
    %c0_i32_1 = arith.constant 0 : i32
    return %arg1, %c0_i32, %c0_i32_0 : i32, i32, i32
  }
  func.func @transform_2(%arg0: i32, %arg1: i32, %arg2: i32) -> (i32, i32, i32) {
    %c0_i32 = arith.constant 0 : i32
    %c0_i32_0 = arith.constant 0 : i32
    %c0_i32_1 = arith.constant 0 : i32
    return %arg1, %c0_i32, %c0_i32_0 : i32, i32, i32
  }
  func.func @transform_3(%arg0: i32, %arg1: i32, %arg2: i32) -> (i32, i32, i32) {
    %c0_i32 = arith.constant 0 : i32
    return %arg0, %arg2, %arg1 : i32, i32, i32
  }
  func.func @transform_4(%arg0: i32, %arg1: i32, %arg2: i32) -> (i32, i32, i32, i32) {
    %c0_i32 = arith.constant 0 : i32
    %c0_i32_0 = arith.constant 0 : i32
    return %arg0, %arg1, %arg2, %c0_i32 : i32, i32, i32, i32
  }
}

</mosaic_0001>

<llo_original>
// kernel: tpu_custom_call.1
$region0: #{tpu_custom_call.1}
  #allocation0 [shape = 'u32[]', space=smem, size = 0x4, offset = 0x4, fixed_abs, tag = 'smem constant byte address 0x4 - core index']
  #allocation1 [shape = 'u32[144,128]{1,0:T(1,128)}', space=vmem, size = 0x12000, scoped, tag = 'internal scratch']
  #allocation2 [shape = 'f32[8,96]{1,0:T(8,128)}', space=vmem, size = 0x1000, scoped, tag = 'scratch operand']
  %s0 = inlined_call_operand.hbm [shape: f32[2,8,32], index: 0, kind: input, shape index: {}]
  %s1 = inlined_call_operand.hbm [shape: f32[1,32,96], index: 1, kind: input, shape index: {}]
  %s2 = inlined_call_operand.vmem [shape: f32[1,1,96], index: 2, kind: input, shape index: {}]
  %s3 = inlined_call_operand.hbm [shape: f32[2,8,32], index: 3, kind: output, shape index: {0}]
  %s4 = inlined_call_operand.hbm [shape: f32[2,4,8,8], index: 4, kind: output, shape index: {1}]
  %5 = xla_tuple %s3, %s4
  %s6 = sld [smem:[#allocation0]]
  $region65: #{tpu_custom_call.1} parent=0
    _
  %s8 = ssub.s32 1, %s6
  %s9 = scalar_select 0, %s8, %s6
  $region1: #{tpu_custom_call.1} parent=0
    #allocation3 [shape = 'u8[8192]{0}', space=vmem, size = 0x2000, scoped, tag = 'input window, operand 0']
    #allocation4 [shape = 's32[2]{0}', space=sflag, size = 0x8, scoped, tag = 'scoped memory for tpu_custom_call.1']
    #allocation5 [shape = 's32[2]{0}', space=sflag, size = 0x8, scoped, tag = 'scoped memory for tpu_custom_call.1']
    #allocation6 [shape = 'u8[16384]{0}', space=vmem, size = 0x4000, scoped, tag = 'input window, operand 1, single buffered']
    #allocation7 [shape = 's32[1]{0}', space=sflag, size = 0x4, scoped, tag = 'scoped memory for tpu_custom_call.1']
    #allocation8 [shape = 'u8[8192]{0}', space=vmem, size = 0x2000, scoped, tag = 'output window, operand 0']
    #allocation9 [shape = 'u8[32768]{0}', space=vmem, size = 0x8000, scoped, tag = 'output window, operand 1']
    #allocation10 [shape = 's32[2]{0}', space=sflag, size = 0x8, scoped, tag = 'scoped memory for tpu_custom_call.1']
    %10 = vsyncpa [#allocation4], 0
    %s11 = scalar_lea.sflag [#allocation4], 1
    %12 = vsyncpa %s11, 0
    %13 = vsyncpa [#allocation7], 0
    %14 = vsyncpa [#allocation5], 0
    %s15 = scalar_lea.sflag [#allocation5], 1
    %16 = vsyncpa %s15, 0
    %17 = vsyncpa [#allocation10], 0
    %s18 = scalar_lea.sflag [#allocation10], 1
    %19 = vsyncpa %s18, 0
    loop: start=0, step=1, limit=4
    $region2: #{tpu_custom_call.1} parent=1 // loop_pre_header
      _
    $region3: #{tpu_custom_call.1} parent=1 // loop_header
      %s21 = sphi 0, %s25
      %p22 = scmp.ge.s32.totalorder %s21, 4
      %s28 = sphi 0, %s47
      %s29 = sphi 0, %s43
      %s30 = sphi 0, %s39
      %s31 = sphi 0, %s28
      %s32 = sphi 0, %s29
      %s33 = sphi 0, %s30
      %s34 = sphi 0, %s31
      %s35 = sphi 0, %s32
      %s36 = sphi 0, %s33
      %s50 = sphi 0, %s52
      %s53 = sphi 0, %s50
      %s54 = sphi 0, %s53
      %s70 = sphi 0, %s54
      %s76 = sphi 0, %s78
      %s79 = sphi 0, %s76
      %s80 = sphi 0, %s79
      %s96 = sphi 0, %s80
      %s102 = sphi 0, %s104
      %s105 = sphi 0, %s102
      %s106 = sphi 0, %s105
      %s122 = sphi 0, %s106
      %s132 = sphi 0, %s134
      %s135 = sphi 0, %s132
      %s136 = sphi 0, %s135
      %s152 = sphi 0, %s136
      %s162 = sphi 0, %s164
      %s165 = sphi 0, %s162
      %s166 = sphi 0, %s165
      %s182 = sphi 0, %s166
    $region4: #{tpu_custom_call.1} parent=1 // loop_header_branch
      %24 = sbr.rel (%p22) target = $region8
    $region5: #{tpu_custom_call.1} parent=1 // loop_body
      %s26 = ssub.s32 %s21, 1
      %s27 = ssub.s32 %s21, 2
      %s37 = sadd.s32 1, %s30
      %p38 = scmp.ge.s32.totalorder %s37, 1
      %s39 = scalar_select %p38, 0, %s37
      %s40 = sadd.s32 1, %s29
      %s41 = scalar_select %p38, %s40, %s29
      %p42 = scmp.ge.s32.totalorder %s41, 1
      %s43 = scalar_select %p42, 0, %s41
      %s44 = sadd.s32 1, %s28
      %s45 = scalar_select %p42, %s44, %s28
      %p46 = scmp.ge.s32.totalorder %s45, 2
      %s47 = scalar_select %p46, 0, %s45
      %s48 = ssub.s32 %s28, %s47
      %p49 = scmp.eq.s32.totalorder %s48, 0
      %s51 = sadd.s32 %s50, 1
      %s52 = scalar_select %p49, %s50, %s51
      %p55 = pneg %p49
      %p56 = scmp.eq.s32.totalorder %s21, 1
      %p57 = por %p55, %p56
      %p58 = scmp.ne.s32.totalorder %s50, %s53
      %p59 = scmp.eq.s32.totalorder %s21, 0
      %p60 = por %p58, %p59
      %p61 = scmp.ne.s32.totalorder %s50, %s53
      %p62 = scmp.eq.s32.totalorder %s26, 1
      %p63 = por %p61, %p62
      %p64 = scmp.ne.s32.totalorder %s53, %s54
      %p65 = scmp.eq.s32.totalorder %s26, 0
      %p66 = por %p64, %p65
      %p67 = scmp.ne.s32.totalorder %s53, %s54
      %p68 = scmp.eq.s32.totalorder %s27, 1
      %p69 = por %p67, %p68
      %p71 = scmp.ne.s32.totalorder %s54, %s70
      %p72 = scmp.eq.s32.totalorder %s27, 0
      %p73 = por %p71, %p72
      %s74 = ssub.s32 %s29, %s43
      %p75 = scmp.eq.s32.totalorder %s74, 0
      %s77 = sadd.s32 %s76, 1
      %s78 = scalar_select %p75, %s76, %s77
      %p81 = pneg %p75
      %p82 = scmp.eq.s32.totalorder %s21, 1
      %p83 = por %p81, %p82
      %p84 = scmp.ne.s32.totalorder %s76, %s79
      %p85 = scmp.eq.s32.totalorder %s21, 0
      %p86 = por %p84, %p85
      %p87 = scmp.ne.s32.totalorder %s76, %s79
      %p88 = scmp.eq.s32.totalorder %s26, 1
      %p89 = por %p87, %p88
      %p90 = scmp.ne.s32.totalorder %s79, %s80
      %p91 = scmp.eq.s32.totalorder %s26, 0
      %p92 = por %p90, %p91
      %p93 = scmp.ne.s32.totalorder %s79, %s80
      %p94 = scmp.eq.s32.totalorder %s27, 1
      %p95 = por %p93, %p94
      %p97 = scmp.ne.s32.totalorder %s80, %s96
      %p98 = scmp.eq.s32.totalorder %s27, 0
      %p99 = por %p97, %p98
      %s100 = ssub.s32 %s29, %s43
      %p101 = scmp.eq.s32.totalorder %s100, 0
      %s103 = sadd.s32 %s102, 1
      %s104 = scalar_select %p101, %s102, %s103
      %p107 = pneg %p101
      %p108 = scmp.eq.s32.totalorder %s21, 1
      %p109 = por %p107, %p108
      %p110 = scmp.ne.s32.totalorder %s102, %s105
      %p111 = scmp.eq.s32.totalorder %s21, 0
      %p112 = por %p110, %p111
      %p113 = scmp.ne.s32.totalorder %s102, %s105
      %p114 = scmp.eq.s32.totalorder %s26, 1
      %p115 = por %p113, %p114
      %p116 = scmp.ne.s32.totalorder %s105, %s106
      %p117 = scmp.eq.s32.totalorder %s26, 0
      %p118 = por %p116, %p117
      %p119 = scmp.ne.s32.totalorder %s105, %s106
      %p120 = scmp.eq.s32.totalorder %s27, 1
      %p121 = por %p119, %p120
      %p123 = scmp.ne.s32.totalorder %s106, %s122
      %p124 = scmp.eq.s32.totalorder %s27, 0
      %p125 = por %p123, %p124
      %s126 = ssub.s32 %s28, %s47
      %s127 = ssub.s32 %s30, %s39
      %s128 = sor.u32 %s126, %s127
      %s129 = ssub.s32 %s29, %s43
      %s130 = sor.u32 %s128, %s129
      %p131 = scmp.eq.s32.totalorder %s130, 0
      %s133 = sadd.s32 %s132, 1
      %s134 = scalar_select %p131, %s132, %s133
      %p137 = pneg %p131
      %p138 = scmp.eq.s32.totalorder %s21, 1
      %p139 = por %p137, %p138
      %p140 = scmp.ne.s32.totalorder %s132, %s135
      %p141 = scmp.eq.s32.totalorder %s21, 0
      %p142 = por %p140, %p141
      %p143 = scmp.ne.s32.totalorder %s132, %s135
      %p144 = scmp.eq.s32.totalorder %s26, 1
      %p145 = por %p143, %p144
      %p146 = scmp.ne.s32.totalorder %s135, %s136
      %p147 = scmp.eq.s32.totalorder %s26, 0
      %p148 = por %p146, %p147
      %p149 = scmp.ne.s32.totalorder %s135, %s136
      %p150 = scmp.eq.s32.totalorder %s27, 1
      %p151 = por %p149, %p150
      %p153 = scmp.ne.s32.totalorder %s136, %s152
      %p154 = scmp.eq.s32.totalorder %s27, 0
      %p155 = por %p153, %p154
      %s156 = ssub.s32 %s28, %s47
      %s157 = ssub.s32 %s29, %s43
      %s158 = sor.u32 %s156, %s157
      %s159 = ssub.s32 %s30, %s39
      %s160 = sor.u32 %s158, %s159
      %p161 = scmp.eq.s32.totalorder %s160, 0
      %s163 = sadd.s32 %s162, 1
      %s164 = scalar_select %p161, %s162, %s163
      %p167 = pneg %p161
      %p168 = scmp.eq.s32.totalorder %s21, 1
      %p169 = por %p167, %p168
      %p170 = scmp.ne.s32.totalorder %s162, %s165
      %p171 = scmp.eq.s32.totalorder %s21, 0
      %p172 = por %p170, %p171
      %p173 = scmp.ne.s32.totalorder %s162, %s165
      %p174 = scmp.eq.s32.totalorder %s26, 1
      %p175 = por %p173, %p174
      %p176 = scmp.ne.s32.totalorder %s165, %s166
      %p177 = scmp.eq.s32.totalorder %s26, 0
      %p178 = por %p176, %p177
      %p179 = scmp.ne.s32.totalorder %s165, %s166
      %p180 = scmp.eq.s32.totalorder %s27, 1
      %p181 = por %p179, %p180
      %p183 = scmp.ne.s32.totalorder %s166, %s182
      %p184 = scmp.eq.s32.totalorder %s27, 0
      %p185 = por %p183, %p184
      %p186 = scmp.le.s32.totalorder 1, %s21
      %p187 = scmp.lt.s32.totalorder %s21, 3
      %p188 = pnand %p186, %p187
      %p189 = pneg %p188
      // Predicated region
      $region9: #{tpu_custom_call.1} parent=5 // pred_check
        _
      $region10: #{tpu_custom_call.1} parent=5 // pred_check_branch
        %191 = sbr.rel (%p188) target = $region12
      $region11: #{tpu_custom_call.1} parent=5 // pred_region
        %s192 = ssub.s32 %s21, 1
        // Predicated region
        $region13: #{tpu_custom_call.1} parent=11 // pred_check
          %p193 = pneg %p92
        $region14: #{tpu_custom_call.1} parent=11 // pred_check_branch
          %195 = sbr.rel (%p193) target = $region16
        $region15: #{tpu_custom_call.1} parent=11 // pred_region
          %s197 = ssub.s32 512, 512
          %198 = vsyncadd [#allocation7], %s197
          %s199 = smul.addr %s32, 4
          %s200 = smul.addr %s199, 128
          %s201 = scalar_lea.hbm %s1, %s200
          %s202 = sshll.u32 [#allocation6], 4
          %s203 = int_to_ptr.vmem [resolvable:$true] %s202
          %208 = dma.hbm_to_vmem [thread:$0]  %s201, 512, %s203, [#allocation7], 128, 128, 8
        $region16: #{tpu_custom_call.1} parent=11 // pred_fallthru
          _
        // Predicated region
        $region17: #{tpu_custom_call.1} parent=11 // pred_check
          %p209 = pneg %p118
        $region18: #{tpu_custom_call.1} parent=11 // pred_check_branch
          %211 = sbr.rel (%p209) target = $region20
        $region19: #{tpu_custom_call.1} parent=11 // pred_region
          %p212 = scmp.lt.s32.totalorder %s32, 0
          %s213 = scalar_select %p212, %s32, 0
          %s214 = scalar_lea.vmem %s2, %s213
        $region20: #{tpu_custom_call.1} parent=11 // pred_fallthru
          _
      $region12: #{tpu_custom_call.1} parent=5 // pred_fallthru
        _
      %p215 = scmp.lt.s32.totalorder %s21, 2
      // Predicated region
      $region21: #{tpu_custom_call.1} parent=5 // pred_check
        %p216 = pneg %p215
      $region22: #{tpu_custom_call.1} parent=5 // pred_check_branch
        %218 = sbr.rel (%p216) target = $region24
      $region23: #{tpu_custom_call.1} parent=5 // pred_region
        // Predicated region
        $region25: #{tpu_custom_call.1} parent=23 // pred_check
          %p219 = pneg %p60
        $region26: #{tpu_custom_call.1} parent=23 // pred_check_branch
          %221 = sbr.rel (%p219) target = $region28
        $region27: #{tpu_custom_call.1} parent=23 // pred_region
          %s222 = sand.u32 %s50, 1
          %s223 = scalar_lea.sflag [#allocation4], %s222
          %s224 = sand.u32 %s50, 1
          %s225 = smul.addr %s224, 8
          %s226 = scalar_lea.vmem [#allocation3], %s225
          %s228 = ssub.s32 128, 128
          %229 = vsyncadd %s223, %s228
          %s230 = smul.addr %s28, 128
          %s231 = scalar_lea.hbm %s0, %s230
          %s233 = sshll.u32 %s226, 4
          %s234 = int_to_ptr.vmem [resolvable:$true] %s233
          %236 = dma.hbm_to_vmem [thread:$0]  %s231, 128, %s234, %s223
        $region28: #{tpu_custom_call.1} parent=23 // pred_fallthru
          _
      $region24: #{tpu_custom_call.1} parent=5 // pred_fallthru
        _
      %p237 = scmp.le.s32.totalorder 1, %s21
      %p238 = scmp.lt.s32.totalorder %s21, 3
      %p239 = pnand %p237, %p238
      %p240 = pneg %p239
      // Predicated region
      $region29: #{tpu_custom_call.1} parent=5 // pred_check
        _
      $region30: #{tpu_custom_call.1} parent=5 // pred_check_branch
        %242 = sbr.rel (%p239) target = $region32
      $region31: #{tpu_custom_call.1} parent=5 // pred_region
        %s243 = ssub.s32 %s21, 1
        %s244 = sand.u32 %s53, 1
        %s245 = scalar_lea.sflag [#allocation4], %s244
        %s246 = sand.u32 %s53, 1
        %s247 = smul.addr %s246, 8
        %s248 = scalar_lea.vmem [#allocation3], %s247
        // Predicated region
        $region33: #{tpu_custom_call.1} parent=31 // pred_check
          %p249 = pneg %p66
        $region34: #{tpu_custom_call.1} parent=31 // pred_check_branch
          %251 = sbr.rel (%p249) target = $region36
        $region35: #{tpu_custom_call.1} parent=31 // pred_region
          %252 = dma.done %s245, 128
        $region36: #{tpu_custom_call.1} parent=31 // pred_fallthru
          _
        // Predicated region
        $region37: #{tpu_custom_call.1} parent=31 // pred_check
          %p253 = pneg %p92
        $region38: #{tpu_custom_call.1} parent=31 // pred_check_branch
          %255 = sbr.rel (%p253) target = $region40
        $region39: #{tpu_custom_call.1} parent=31 // pred_region
          %256 = dma.done [#allocation7], 512
        $region40: #{tpu_custom_call.1} parent=31 // pred_fallthru
          _
        %s257 = sand.u32 %s53, 1
        %s258 = scalar_lea.sflag [#allocation4], %s257
        %s259 = sand.u32 %s53, 1
        %s260 = smul.addr %s259, 8
        %s261 = scalar_lea.vmem [#allocation3], %s260
        %p262 = pneg %p66
        %p263 = pneg %p63
        %p264 = pneg %p92
        %p265 = pneg %p89
        %p266 = scmp.lt.s32.totalorder %s32, 0
        %s267 = scalar_select %p266, %s32, 0
        %s268 = scalar_lea.vmem %s2, %s267
        %p269 = pneg %p118
        %p270 = pneg %p115
        %p271 = pneg %p148
        %p272 = pneg %p145
        %s273 = sand.u32 %s135, 1
        %s274 = scalar_lea.sflag [#allocation5], %s273
        %s275 = sand.u32 %s135, 1
        %s276 = smul.addr %s275, 8
        %s277 = scalar_lea.vmem [#allocation8], %s276
        %p278 = pneg %p178
        %p279 = pneg %p175
        %s280 = sand.u32 %s165, 1
        %s281 = scalar_lea.sflag [#allocation10], %s280
        %s282 = sand.u32 %s165, 1
        %s283 = smul.addr %s282, 32
        %s284 = scalar_lea.vmem [#allocation9], %s283
        %p285 = scmp.lt.s32.totalorder %s32, 0
        %s286 = scalar_select %p285, %s32, 0
        %s287 = scalar_lea.vmem %s2, %s286
        %s288 = smul.u32 4, %s32
        %p289 = scmp.eq.s32.totalorder %s33, 0
        // Predicated region
        $region41: #{tpu_custom_call.1} parent=31 // pred_check
          %p290 = pneg %p289
        $region42: #{tpu_custom_call.1} parent=31 // pred_check_branch
          %292 = sbr.rel (%p290) target = $region44
        $region43: #{tpu_custom_call.1} parent=31 // pred_region
          %v293 = vld [vmem:[%s248] sm:$0xff]
          %v294 = vld [vmem:[#allocation6] sm:$0xff]
          %v295 = vld [vmem:[#allocation6 + $0x8] sm:$0xff]
          %v296 = vld [vmem:[#allocation6 + $0x10] sm:$0xff]
          %v297 = vld [vmem:[#allocation6 + $0x18] sm:$0xff]
          %v298 = vld [vmem:[%s287] sm:$0x1]
          %v300 = vlaneseq
          %v301 = vshrl.u32 %v300, 7
          %v302 = vsub.s32 0, %v301
          %v303 = vrot.slane %v298, %v302
          %vm305 = vcmask 261120
          %v307 = vsel %vm305, %v293, 0
          %309 = vmatprep.subr.mxu0 0.0
          %310 = vmatpush1.msra.mxu0 %v294
          %311 = vmatprep.subr.mxu0 0.0
          %312 = vmatpush1.msra.mxu0 %v295
          %313 = vmatprep.subr.mxu0 0.0
          %314 = vmatpush1.msra.mxu0 %v296
          %315 = vmatprep.subr.mxu0 0.0
          %316 = vmatpush1.msra.mxu0 %v297
          %317 = vmatprep.subr.mxu0 0.0
          %318 = vmatpush1.msra.mxu0 0.0
          %319 = vmatprep.subr.mxu0 0.0
          %320 = vmatpush1.msra.mxu0 0.0
          %321 = vmatprep.subr.mxu0 0.0
          %322 = vmatpush1.msra.mxu0 0.0
          %323 = vmatprep.subr.mxu0 0.0
          %324 = vmatpush1.msra.mxu0 0.0
          %325 = vmatprep.subr.mxu0 0.0
          %326 = vmatpush1.msra.mxu0 0.0
          %327 = vmatprep.subr.mxu0 0.0
          %328 = vmatpush1.msra.mxu0 0.0
          %329 = vmatprep.subr.mxu0 0.0
          %330 = vmatpush1.msra.mxu0 0.0
          %331 = vmatprep.subr.mxu0 0.0
          %332 = vmatpush1.msra.mxu0 0.0
          %333 = vmatprep.subr.mxu0 0.0
          %334 = vmatpush1.msra.mxu0 0.0
          %335 = vmatprep.subr.mxu0 0.0
          %336 = vmatpush1.msra.mxu0 0.0
          %337 = vmatprep.subr.mxu0 0.0
          %338 = vmatpush1.msra.mxu0 0.0
          %339 = vmatprep.subr.mxu0 0.0
          %340 = vmatpush1.msra.mxu0 0.0
          %341 = vmatprep.subr.mxu0 0.0
          %342 = vmatpush1.msra.mxu0 0.0
          %343 = vmatprep.subr.mxu0 0.0
          %344 = vmatpush1.msra.mxu0 0.0
          %345 = vmatprep.subr.mxu0 0.0
          %346 = vmatpush1.msra.mxu0 0.0
          %347 = vmatprep.subr.mxu0 0.0
          %348 = vmatpush1.msra.mxu0 0.0
          %349 = vmatprep.subr.mxu0 0.0
          %350 = vmatpush1.msra.mxu0 0.0
          %351 = vmatprep.subr.mxu0 0.0
          %352 = vmatpush1.msra.mxu0 0.0
          %353 = vmatprep.subr.mxu0 0.0
          %354 = vmatpush1.msra.mxu0 0.0
          %355 = vmatprep.subr.mxu0 0.0
          %356 = vmatpush1.msra.mxu0 0.0
          %357 = vmatprep.subr.mxu0 0.0
          %358 = vmatpush1.msra.mxu0 0.0
          %359 = vmatprep.subr.mxu0 0.0
          %360 = vmatpush1.msra.mxu0 0.0
          %361 = vmatprep.subr.mxu0 0.0
          %362 = vmatpush1.msra.mxu0 0.0
          %363 = vmatprep.subr.mxu0 0.0
          %364 = vmatpush1.msra.mxu0 0.0
          %365 = vmatprep.subr.mxu0 0.0
          %366 = vmatpush1.msra.mxu0 0.0
          %367 = vmatprep.subr.mxu0 0.0
          %368 = vmatpush1.msra.mxu0 0.0
          %369 = vmatprep.subr.mxu0 0.0
          %370 = vmatpush1.msra.mxu0 0.0
          %371 = vmatprep.subr.mxu0 0.0
          %372 = vmatpush1.msra.mxu0 0.0
          %373 = vmatprep.mubr.f32.mxu0 0.0
          %374 = vmatmul.mubr.f32.gmra.mrb[0].mxu0 %v307
          %v375 = vpop.f32.mrb[0].mxu0
          %v376 = vadd.f32 %v303, %v375
          %v377 = vpop.f32.mrb[0].mxu0
          %378 = vdwg.mxu0
          %vm379 = vcmask 785408
          %380 = vst.msk [vmem:[#allocation2] sm:$0xff] %vm379, %v376
        $region44: #{tpu_custom_call.1} parent=31 // pred_fallthru
          _
        %s381 = smul.u32 %s33, 8
        %v382 = vld [vmem:[#allocation2] sm:$0xff]
        %s383 = scalar_lea.vmem [#allocation2], %s381
        %v384 = vld [vmem:[%s383] sm:$0xff]
        %v385 = vmul.f32 %v384, %v384
        %v386 = vadd.f32 %v385, 0.1
        %v387 = vrcp.pop %v386
        %v388 = vmul.f32 %v386, %v387
        %v389 = vsub.f32 2.0, %v388
        %v390 = vmul.f32 %v387, %v389
        %v391 = vmul.f32 %v384, %v390
        %v392 = vmul.f32 %v391, -0.35355338
        %394 = vrot.lane.b32.xlu0 %v392, 96
        %v395 = vpop.permute.xlu0 %394
        %vm396 = vcmask 64512
        %v397 = vsel %vm396, %v395, 0
        %v400 = vsel %vm396, %v382, 0
        %402 = vmatprep.subr.mxu0 0.0
        %403 = vmatpush1.xpose.msra.mxu0 %v400
        %404 = vmatprep.subr.mxu0 0.0
        %405 = vmatpush1.xpose.msra.mxu0 0.0
        %406 = vmatprep.subr.mxu0 0.0
        %407 = vmatpush1.xpose.msra.mxu0 0.0
        %408 = vmatprep.subr.mxu0 0.0
        %409 = vmatpush1.xpose.msra.mxu0 0.0
        %410 = vmatprep.subr.mxu0 0.0
        %411 = vmatpush1.xpose.msra.mxu0 0.0
        %412 = vmatprep.subr.mxu0 0.0
        %413 = vmatpush1.xpose.msra.mxu0 0.0
        %414 = vmatprep.subr.mxu0 0.0
        %415 = vmatpush1.xpose.msra.mxu0 0.0
        %416 = vmatprep.subr.mxu0 0.0
        %417 = vmatpush1.xpose.msra.mxu0 0.0
        %418 = vmatprep.subr.mxu0 0.0
        %419 = vmatpush1.xpose.msra.mxu0 0.0
        %420 = vmatprep.subr.mxu0 0.0
        %421 = vmatpush1.xpose.msra.mxu0 0.0
        %422 = vmatprep.subr.mxu0 0.0
        %423 = vmatpush1.xpose.msra.mxu0 0.0
        %424 = vmatprep.subr.mxu0 0.0
        %425 = vmatpush1.xpose.msra.mxu0 0.0
        %426 = vmatprep.subr.mxu0 0.0
        %427 = vmatpush1.xpose.msra.mxu0 0.0
        %428 = vmatprep.subr.mxu0 0.0
        %429 = vmatpush1.xpose.msra.mxu0 0.0
        %430 = vmatprep.subr.mxu0 0.0
        %431 = vmatpush1.xpose.msra.mxu0 0.0
        %432 = vmatprep.subr.mxu0 0.0
        %433 = vmatpush1.xpose.msra.mxu0 0.0
        %434 = vmatprep.subr.mxu0 0.0
        %435 = vmatpush1.xpose.msra.mxu0 0.0
        %436 = vmatprep.subr.mxu0 0.0
        %437 = vmatpush1.xpose.msra.mxu0 0.0
        %438 = vmatprep.subr.mxu0 0.0
        %439 = vmatpush1.xpose.msra.mxu0 0.0
        %440 = vmatprep.subr.mxu0 0.0
        %441 = vmatpush1.xpose.msra.mxu0 0.0
        %442 = vmatprep.subr.mxu0 0.0
        %443 = vmatpush1.xpose.msra.mxu0 0.0
        %444 = vmatprep.subr.mxu0 0.0
        %445 = vmatpush1.xpose.msra.mxu0 0.0
        %446 = vmatprep.subr.mxu0 0.0
        %447 = vmatpush1.xpose.msra.mxu0 0.0
        %448 = vmatprep.subr.mxu0 0.0
        %449 = vmatpush1.xpose.msra.mxu0 0.0
        %450 = vmatprep.subr.mxu0 0.0
        %451 = vmatpush1.xpose.msra.mxu0 0.0
        %452 = vmatprep.subr.mxu0 0.0
        %453 = vmatpush1.xpose.msra.mxu0 0.0
        %454 = vmatprep.subr.mxu0 0.0
        %455 = vmatpush1.xpose.msra.mxu0 0.0
        %456 = vmatprep.subr.mxu0 0.0
        %457 = vmatpush1.xpose.msra.mxu0 0.0
        %458 = vmatprep.subr.mxu0 0.0
        %459 = vmatpush1.xpose.msra.mxu0 0.0
        %460 = vmatprep.subr.mxu0 0.0
        %461 = vmatpush1.xpose.msra.mxu0 0.0
        %462 = vmatprep.subr.mxu0 0.0
        %463 = vmatpush1.xpose.msra.mxu0 0.0
        %464 = vmatprep.subr.mxu0 0.0
        %465 = vmatpush1.xpose.msra.mxu0 0.0
        %466 = vmatprep.mubr.f32.mxu0 0.0
        %467 = vmatmul.mubr.f32.gmra.mrb[0].mxu0 %v397
        %v468 = vpop.f32.mrb[0].mxu0
        %v469 = vadd.f32 0.0, %v468
        %v470 = vpop.f32.mrb[0].mxu0
        %471 = vdwg.mxu0
        %v472 = vsel %vm396, %v469, -inf
        %473 = vmax.xlane.f32.xlu0 %v472
        %v474 = vpop.xlane.xlu0 %473
        %v475 = vsub.f32 %v469, %v474
        %v476 = vmul.f32 %v475, 1.442695
        %v477 = vpow.pop %v476
        %v478 = vsel %vm396, %v477, 0.0
        %479 = vadd.xlane.f32.xlu0 %v478
        %v480 = vpop.xlane.xlu0 %479
        %v481 = vrcp.pop %v480
        %v482 = vmul.f32 %v480, %v481
        %v483 = vsub.f32 2.0, %v482
        %v484 = vmul.f32 %v481, %v483
        %v485 = vmul.f32 %v477, %v484
        %486 = vst.msk [vmem:[%s284] sm:$0xff] %vm396, %v485
        %487 = vrot.lane.b32.xlu0 %v382, 64
        %v488 = vpop.permute.xlu0 %487
        %v491 = vsel %vm396, %v485, 0
        %493 = vmatprep.subr.mxu0 0.0
        %494 = vmatpush1.msra.mxu0 %v488
        %495 = vmatprep.subr.mxu0 0.0
        %496 = vmatpush1.msra.mxu0 0.0
        %497 = vmatprep.subr.mxu0 0.0
        %498 = vmatpush1.msra.mxu0 0.0
        %499 = vmatprep.subr.mxu0 0.0
        %500 = vmatpush1.msra.mxu0 0.0
        %501 = vmatprep.subr.mxu0 0.0
        %502 = vmatpush1.msra.mxu0 0.0
        %503 = vmatprep.subr.mxu0 0.0
        %504 = vmatpush1.msra.mxu0 0.0
        %505 = vmatprep.subr.mxu0 0.0
        %506 = vmatpush1.msra.mxu0 0.0
        %507 = vmatprep.subr.mxu0 0.0
        %508 = vmatpush1.msra.mxu0 0.0
        %509 = vmatprep.subr.mxu0 0.0
        %510 = vmatpush1.msra.mxu0 0.0
        %511 = vmatprep.subr.mxu0 0.0
        %512 = vmatpush1.msra.mxu0 0.0
        %513 = vmatprep.subr.mxu0 0.0
        %514 = vmatpush1.msra.mxu0 0.0
        %515 = vmatprep.subr.mxu0 0.0
        %516 = vmatpush1.msra.mxu0 0.0
        %517 = vmatprep.subr.mxu0 0.0
        %518 = vmatpush1.msra.mxu0 0.0
        %519 = vmatprep.subr.mxu0 0.0
        %520 = vmatpush1.msra.mxu0 0.0
        %521 = vmatprep.subr.mxu0 0.0
        %522 = vmatpush1.msra.mxu0 0.0
        %523 = vmatprep.subr.mxu0 0.0
        %524 = vmatpush1.msra.mxu0 0.0
        %525 = vmatprep.subr.mxu0 0.0
        %526 = vmatpush1.msra.mxu0 0.0
        %527 = vmatprep.subr.mxu0 0.0
        %528 = vmatpush1.msra.mxu0 0.0
        %529 = vmatprep.subr.mxu0 0.0
        %530 = vmatpush1.msra.mxu0 0.0
        %531 = vmatprep.subr.mxu0 0.0
        %532 = vmatpush1.msra.mxu0 0.0
        %533 = vmatprep.subr.mxu0 0.0
        %534 = vmatpush1.msra.mxu0 0.0
        %535 = vmatprep.subr.mxu0 0.0
        %536 = vmatpush1.msra.mxu0 0.0
        %537 = vmatprep.subr.mxu0 0.0
        %538 = vmatpush1.msra.mxu0 0.0
        %539 = vmatprep.subr.mxu0 0.0
        %540 = vmatpush1.msra.mxu0 0.0
        %541 = vmatprep.subr.mxu0 0.0
        %542 = vmatpush1.msra.mxu0 0.0
        %543 = vmatprep.subr.mxu0 0.0
        %544 = vmatpush1.msra.mxu0 0.0
        %545 = vmatprep.subr.mxu0 0.0
        %546 = vmatpush1.msra.mxu0 0.0
        %547 = vmatprep.subr.mxu0 0.0
        %548 = vmatpush1.msra.mxu0 0.0
        %549 = vmatprep.subr.mxu0 0.0
        %550 = vmatpush1.msra.mxu0 0.0
        %551 = vmatprep.subr.mxu0 0.0
        %552 = vmatpush1.msra.mxu0 0.0
        %553 = vmatprep.subr.mxu0 0.0
        %554 = vmatpush1.msra.mxu0 0.0
        %555 = vmatprep.subr.mxu0 0.0
        %556 = vmatpush1.msra.mxu0 0.0
        %557 = vmatprep.mubr.f32.mxu0 0.0
        %558 = vmatmul.mubr.f32.gmra.mrb[0].mxu0 %v491
        %v559 = vpop.f32.mrb[0].mxu0
        %v560 = vadd.f32 0.0, %v559
        %v561 = vpop.f32.mrb[0].mxu0
        %562 = vdwg.mxu0
        %563 = vrot.lane.b32.xlu0 %v392, 88
        %v564 = vpop.permute.xlu0 %563
        %565 = vrot.lane.b32.xlu0 %v382, 120
        %v566 = vpop.permute.xlu0 %565
        %v567 = vsel %vm396, %v564, 0
        %v569 = vsel %vm396, %v566, 0
        %571 = vmatprep.subr.mxu0 0.0
        %572 = vmatpush1.xpose.msra.mxu0 %v569
        %573 = vmatprep.subr.mxu0 0.0
        %574 = vmatpush1.xpose.msra.mxu0 0.0
        %575 = vmatprep.subr.mxu0 0.0
        %576 = vmatpush1.xpose.msra.mxu0 0.0
        %577 = vmatprep.subr.mxu0 0.0
        %578 = vmatpush1.xpose.msra.mxu0 0.0
        %579 = vmatprep.subr.mxu0 0.0
        %580 = vmatpush1.xpose.msra.mxu0 0.0
        %581 = vmatprep.subr.mxu0 0.0
        %582 = vmatpush1.xpose.msra.mxu0 0.0
        %583 = vmatprep.subr.mxu0 0.0
        %584 = vmatpush1.xpose.msra.mxu0 0.0
        %585 = vmatprep.subr.mxu0 0.0
        %586 = vmatpush1.xpose.msra.mxu0 0.0
        %587 = vmatprep.subr.mxu0 0.0
        %588 = vmatpush1.xpose.msra.mxu0 0.0
        %589 = vmatprep.subr.mxu0 0.0
        %590 = vmatpush1.xpose.msra.mxu0 0.0
        %591 = vmatprep.subr.mxu0 0.0
        %592 = vmatpush1.xpose.msra.mxu0 0.0
        %593 = vmatprep.subr.mxu0 0.0
        %594 = vmatpush1.xpose.msra.mxu0 0.0
        %595 = vmatprep.subr.mxu0 0.0
        %596 = vmatpush1.xpose.msra.mxu0 0.0
        %597 = vmatprep.subr.mxu0 0.0
        %598 = vmatpush1.xpose.msra.mxu0 0.0
        %599 = vmatprep.subr.mxu0 0.0
        %600 = vmatpush1.xpose.msra.mxu0 0.0
        %601 = vmatprep.subr.mxu0 0.0
        %602 = vmatpush1.xpose.msra.mxu0 0.0
        %603 = vmatprep.subr.mxu0 0.0
        %604 = vmatpush1.xpose.msra.mxu0 0.0
        %605 = vmatprep.subr.mxu0 0.0
        %606 = vmatpush1.xpose.msra.mxu0 0.0
        %607 = vmatprep.subr.mxu0 0.0
        %608 = vmatpush1.xpose.msra.mxu0 0.0
        %609 = vmatprep.subr.mxu0 0.0
        %610 = vmatpush1.xpose.msra.mxu0 0.0
        %611 = vmatprep.subr.mxu0 0.0
        %612 = vmatpush1.xpose.msra.mxu0 0.0
        %613 = vmatprep.subr.mxu0 0.0
        %614 = vmatpush1.xpose.msra.mxu0 0.0
        %615 = vmatprep.subr.mxu0 0.0
        %616 = vmatpush1.xpose.msra.mxu0 0.0
        %617 = vmatprep.subr.mxu0 0.0
        %618 = vmatpush1.xpose.msra.mxu0 0.0
        %619 = vmatprep.subr.mxu0 0.0
        %620 = vmatpush1.xpose.msra.mxu0 0.0
        %621 = vmatprep.subr.mxu0 0.0
        %622 = vmatpush1.xpose.msra.mxu0 0.0
        %623 = vmatprep.subr.mxu0 0.0
        %624 = vmatpush1.xpose.msra.mxu0 0.0
        %625 = vmatprep.subr.mxu0 0.0
        %626 = vmatpush1.xpose.msra.mxu0 0.0
        %627 = vmatprep.subr.mxu0 0.0
        %628 = vmatpush1.xpose.msra.mxu0 0.0
        %629 = vmatprep.subr.mxu0 0.0
        %630 = vmatpush1.xpose.msra.mxu0 0.0
        %631 = vmatprep.subr.mxu0 0.0
        %632 = vmatpush1.xpose.msra.mxu0 0.0
        %633 = vmatprep.subr.mxu0 0.0
        %634 = vmatpush1.xpose.msra.mxu0 0.0
        %635 = vmatprep.mubr.f32.mxu0 0.0
        %636 = vmatmul.mubr.f32.gmra.mrb[0].mxu0 %v567
        %v637 = vpop.f32.mrb[0].mxu0
        %v638 = vadd.f32 0.0, %v637
        %v639 = vpop.f32.mrb[0].mxu0
        %640 = vdwg.mxu0
        %v641 = vsel %vm396, %v638, -inf
        %642 = vmax.xlane.f32.xlu0 %v641
        %v643 = vpop.xlane.xlu0 %642
        %v644 = vsub.f32 %v638, %v643
        %v645 = vmul.f32 %v644, 1.442695
        %v646 = vpow.pop %v645
        %v647 = vsel %vm396, %v646, 0.0
        %648 = vadd.xlane.f32.xlu0 %v647
        %v649 = vpop.xlane.xlu0 %648
        %v650 = vrcp.pop %v649
        %v651 = vmul.f32 %v649, %v650
        %v652 = vsub.f32 2.0, %v651
        %v653 = vmul.f32 %v650, %v652
        %v654 = vmul.f32 %v646, %v653
        %s655 = scalar_lea.vmem %s284, 8 [#allocation9]
        %656 = vst.msk [vmem:[%s655] sm:$0xff] %vm396, %v654
        %657 = vrot.lane.b32.xlu0 %v382, 56
        %v658 = vpop.permute.xlu0 %657
        %v661 = vsel %vm396, %v654, 0
        %663 = vmatprep.subr.mxu0 0.0
        %664 = vmatpush1.msra.mxu0 %v658
        %665 = vmatprep.subr.mxu0 0.0
        %666 = vmatpush1.msra.mxu0 0.0
        %667 = vmatprep.subr.mxu0 0.0
        %668 = vmatpush1.msra.mxu0 0.0
        %669 = vmatprep.subr.mxu0 0.0
        %670 = vmatpush1.msra.mxu0 0.0
        %671 = vmatprep.subr.mxu0 0.0
        %672 = vmatpush1.msra.mxu0 0.0
        %673 = vmatprep.subr.mxu0 0.0
        %674 = vmatpush1.msra.mxu0 0.0
        %675 = vmatprep.subr.mxu0 0.0
        %676 = vmatpush1.msra.mxu0 0.0
        %677 = vmatprep.subr.mxu0 0.0
        %678 = vmatpush1.msra.mxu0 0.0
        %679 = vmatprep.subr.mxu0 0.0
        %680 = vmatpush1.msra.mxu0 0.0
        %681 = vmatprep.subr.mxu0 0.0
        %682 = vmatpush1.msra.mxu0 0.0
        %683 = vmatprep.subr.mxu0 0.0
        %684 = vmatpush1.msra.mxu0 0.0
        %685 = vmatprep.subr.mxu0 0.0
        %686 = vmatpush1.msra.mxu0 0.0
        %687 = vmatprep.subr.mxu0 0.0
        %688 = vmatpush1.msra.mxu0 0.0
        %689 = vmatprep.subr.mxu0 0.0
        %690 = vmatpush1.msra.mxu0 0.0
        %691 = vmatprep.subr.mxu0 0.0
        %692 = vmatpush1.msra.mxu0 0.0
        %693 = vmatprep.subr.mxu0 0.0
        %694 = vmatpush1.msra.mxu0 0.0
        %695 = vmatprep.subr.mxu0 0.0
        %696 = vmatpush1.msra.mxu0 0.0
        %697 = vmatprep.subr.mxu0 0.0
        %698 = vmatpush1.msra.mxu0 0.0
        %699 = vmatprep.subr.mxu0 0.0
        %700 = vmatpush1.msra.mxu0 0.0
        %701 = vmatprep.subr.mxu0 0.0
        %702 = vmatpush1.msra.mxu0 0.0
        %703 = vmatprep.subr.mxu0 0.0
        %704 = vmatpush1.msra.mxu0 0.0
        %705 = vmatprep.subr.mxu0 0.0
        %706 = vmatpush1.msra.mxu0 0.0
        %707 = vmatprep.subr.mxu0 0.0
        %708 = vmatpush1.msra.mxu0 0.0
        %709 = vmatprep.subr.mxu0 0.0
        %710 = vmatpush1.msra.mxu0 0.0
        %711 = vmatprep.subr.mxu0 0.0
        %712 = vmatpush1.msra.mxu0 0.0
        %713 = vmatprep.subr.mxu0 0.0
        %714 = vmatpush1.msra.mxu0 0.0
        %715 = vmatprep.subr.mxu0 0.0
        %716 = vmatpush1.msra.mxu0 0.0
        %717 = vmatprep.subr.mxu0 0.0
        %718 = vmatpush1.msra.mxu0 0.0
        %719 = vmatprep.subr.mxu0 0.0
        %720 = vmatpush1.msra.mxu0 0.0
        %721 = vmatprep.subr.mxu0 0.0
        %722 = vmatpush1.msra.mxu0 0.0
        %723 = vmatprep.subr.mxu0 0.0
        %724 = vmatpush1.msra.mxu0 0.0
        %725 = vmatprep.subr.mxu0 0.0
        %726 = vmatpush1.msra.mxu0 0.0
        %727 = vmatprep.mubr.f32.mxu0 0.0
        %728 = vmatmul.mubr.f32.gmra.mrb[0].mxu0 %v661
        %v729 = vpop.f32.mrb[0].mxu0
        %v730 = vadd.f32 0.0, %v729
        %v731 = vpop.f32.mrb[0].mxu0
        %732 = vdwg.mxu0
        %733 = vrot.lane.b32.xlu0 %v392, 80
        %v734 = vpop.permute.xlu0 %733
        %735 = vrot.lane.b32.xlu0 %v382, 112
        %v736 = vpop.permute.xlu0 %735
        %v737 = vsel %vm396, %v734, 0
        %v739 = vsel %vm396, %v736, 0
        %741 = vmatprep.subr.mxu0 0.0
        %742 = vmatpush1.xpose.msra.mxu0 %v739
        %743 = vmatprep.subr.mxu0 0.0
        %744 = vmatpush1.xpose.msra.mxu0 0.0
        %745 = vmatprep.subr.mxu0 0.0
        %746 = vmatpush1.xpose.msra.mxu0 0.0
        %747 = vmatprep.subr.mxu0 0.0
        %748 = vmatpush1.xpose.msra.mxu0 0.0
        %749 = vmatprep.subr.mxu0 0.0
        %750 = vmatpush1.xpose.msra.mxu0 0.0
        %751 = vmatprep.subr.mxu0 0.0
        %752 = vmatpush1.xpose.msra.mxu0 0.0
        %753 = vmatprep.subr.mxu0 0.0
        %754 = vmatpush1.xpose.msra.mxu0 0.0
        %755 = vmatprep.subr.mxu0 0.0
        %756 = vmatpush1.xpose.msra.mxu0 0.0
        %757 = vmatprep.subr.mxu0 0.0
        %758 = vmatpush1.xpose.msra.mxu0 0.0
        %759 = vmatprep.subr.mxu0 0.0
        %760 = vmatpush1.xpose.msra.mxu0 0.0
        %761 = vmatprep.subr.mxu0 0.0
        %762 = vmatpush1.xpose.msra.mxu0 0.0
        %763 = vmatprep.subr.mxu0 0.0
        %764 = vmatpush1.xpose.msra.mxu0 0.0
        %765 = vmatprep.subr.mxu0 0.0
        %766 = vmatpush1.xpose.msra.mxu0 0.0
        %767 = vmatprep.subr.mxu0 0.0
        %768 = vmatpush1.xpose.msra.mxu0 0.0
        %769 = vmatprep.subr.mxu0 0.0
        %770 = vmatpush1.xpose.msra.mxu0 0.0
        %771 = vmatprep.subr.mxu0 0.0
        %772 = vmatpush1.xpose.msra.mxu0 0.0
        %773 = vmatprep.subr.mxu0 0.0
        %774 = vmatpush1.xpose.msra.mxu0 0.0
        %775 = vmatprep.subr.mxu0 0.0
        %776 = vmatpush1.xpose.msra.mxu0 0.0
        %777 = vmatprep.subr.mxu0 0.0
        %778 = vmatpush1.xpose.msra.mxu0 0.0
        %779 = vmatprep.subr.mxu0 0.0
        %780 = vmatpush1.xpose.msra.mxu0 0.0
        %781 = vmatprep.subr.mxu0 0.0
        %782 = vmatpush1.xpose.msra.mxu0 0.0
        %783 = vmatprep.subr.mxu0 0.0
        %784 = vmatpush1.xpose.msra.mxu0 0.0
        %785 = vmatprep.subr.mxu0 0.0
        %786 = vmatpush1.xpose.msra.mxu0 0.0
        %787 = vmatprep.subr.mxu0 0.0
        %788 = vmatpush1.xpose.msra.mxu0 0.0
        %789 = vmatprep.subr.mxu0 0.0
        %790 = vmatpush1.xpose.msra.mxu0 0.0
        %791 = vmatprep.subr.mxu0 0.0
        %792 = vmatpush1.xpose.msra.mxu0 0.0
        %793 = vmatprep.subr.mxu0 0.0
        %794 = vmatpush1.xpose.msra.mxu0 0.0
        %795 = vmatprep.subr.mxu0 0.0
        %796 = vmatpush1.xpose.msra.mxu0 0.0
        %797 = vmatprep.subr.mxu0 0.0
        %798 = vmatpush1.xpose.msra.mxu0 0.0
        %799 = vmatprep.subr.mxu0 0.0
        %800 = vmatpush1.xpose.msra.mxu0 0.0
        %801 = vmatprep.subr.mxu0 0.0
        %802 = vmatpush1.xpose.msra.mxu0 0.0
        %803 = vmatprep.subr.mxu0 0.0
        %804 = vmatpush1.xpose.msra.mxu0 0.0
        %805 = vmatprep.mubr.f32.mxu0 0.0
        %806 = vmatmul.mubr.f32.gmra.mrb[0].mxu0 %v737
        %v807 = vpop.f32.mrb[0].mxu0
        %v808 = vadd.f32 0.0, %v807
        %v809 = vpop.f32.mrb[0].mxu0
        %810 = vdwg.mxu0
        %v811 = vsel %vm396, %v808, -inf
        %812 = vmax.xlane.f32.xlu0 %v811
        %v813 = vpop.xlane.xlu0 %812
        %v814 = vsub.f32 %v808, %v813
        %v815 = vmul.f32 %v814, 1.442695
        %v816 = vpow.pop %v815
        %v817 = vsel %vm396, %v816, 0.0
        %818 = vadd.xlane.f32.xlu0 %v817
        %v819 = vpop.xlane.xlu0 %818
        %v820 = vrcp.pop %v819
        %v821 = vmul.f32 %v819, %v820
        %v822 = vsub.f32 2.0, %v821
        %v823 = vmul.f32 %v820, %v822
        %v824 = vmul.f32 %v816, %v823
        %s825 = scalar_lea.vmem %s284, 16 [#allocation9]
        %826 = vst.msk [vmem:[%s825] sm:$0xff] %vm396, %v824
        %827 = vrot.lane.b32.xlu0 %v382, 48
        %v828 = vpop.permute.xlu0 %827
        %v831 = vsel %vm396, %v824, 0
        %833 = vmatprep.subr.mxu0 0.0
        %834 = vmatpush1.msra.mxu0 %v828
        %835 = vmatprep.subr.mxu0 0.0
        %836 = vmatpush1.msra.mxu0 0.0
        %837 = vmatprep.subr.mxu0 0.0
        %838 = vmatpush1.msra.mxu0 0.0
        %839 = vmatprep.subr.mxu0 0.0
        %840 = vmatpush1.msra.mxu0 0.0
        %841 = vmatprep.subr.mxu0 0.0
        %842 = vmatpush1.msra.mxu0 0.0
        %843 = vmatprep.subr.mxu0 0.0
        %844 = vmatpush1.msra.mxu0 0.0
        %845 = vmatprep.subr.mxu0 0.0
        %846 = vmatpush1.msra.mxu0 0.0
        %847 = vmatprep.subr.mxu0 0.0
        %848 = vmatpush1.msra.mxu0 0.0
        %849 = vmatprep.subr.mxu0 0.0
        %850 = vmatpush1.msra.mxu0 0.0
        %851 = vmatprep.subr.mxu0 0.0
        %852 = vmatpush1.msra.mxu0 0.0
        %853 = vmatprep.subr.mxu0 0.0
        %854 = vmatpush1.msra.mxu0 0.0
        %855 = vmatprep.subr.mxu0 0.0
        %856 = vmatpush1.msra.mxu0 0.0
        %857 = vmatprep.subr.mxu0 0.0
        %858 = vmatpush1.msra.mxu0 0.0
        %859 = vmatprep.subr.mxu0 0.0
        %860 = vmatpush1.msra.mxu0 0.0
        %861 = vmatprep.subr.mxu0 0.0
        %862 = vmatpush1.msra.mxu0 0.0
        %863 = vmatprep.subr.mxu0 0.0
        %864 = vmatpush1.msra.mxu0 0.0
        %865 = vmatprep.subr.mxu0 0.0
        %866 = vmatpush1.msra.mxu0 0.0
        %867 = vmatprep.subr.mxu0 0.0
        %868 = vmatpush1.msra.mxu0 0.0
        %869 = vmatprep.subr.mxu0 0.0
        %870 = vmatpush1.msra.mxu0 0.0
        %871 = vmatprep.subr.mxu0 0.0
        %872 = vmatpush1.msra.mxu0 0.0
        %873 = vmatprep.subr.mxu0 0.0
        %874 = vmatpush1.msra.mxu0 0.0
        %875 = vmatprep.subr.mxu0 0.0
        %876 = vmatpush1.msra.mxu0 0.0
        %877 = vmatprep.subr.mxu0 0.0
        %878 = vmatpush1.msra.mxu0 0.0
        %879 = vmatprep.subr.mxu0 0.0
        %880 = vmatpush1.msra.mxu0 0.0
        %881 = vmatprep.subr.mxu0 0.0
        %882 = vmatpush1.msra.mxu0 0.0
        %883 = vmatprep.subr.mxu0 0.0
        %884 = vmatpush1.msra.mxu0 0.0
        %885 = vmatprep.subr.mxu0 0.0
        %886 = vmatpush1.msra.mxu0 0.0
        %887 = vmatprep.subr.mxu0 0.0
        %888 = vmatpush1.msra.mxu0 0.0
        %889 = vmatprep.subr.mxu0 0.0
        %890 = vmatpush1.msra.mxu0 0.0
        %891 = vmatprep.subr.mxu0 0.0
        %892 = vmatpush1.msra.mxu0 0.0
        %893 = vmatprep.subr.mxu0 0.0
        %894 = vmatpush1.msra.mxu0 0.0
        %895 = vmatprep.subr.mxu0 0.0
        %896 = vmatpush1.msra.mxu0 0.0
        %897 = vmatprep.mubr.f32.mxu0 0.0
        %898 = vmatmul.mubr.f32.gmra.mrb[0].mxu0 %v831
        %v899 = vpop.f32.mrb[0].mxu0
        %v900 = vadd.f32 0.0, %v899
        %v901 = vpop.f32.mrb[0].mxu0
        %902 = vdwg.mxu0
        %903 = vrot.lane.b32.xlu0 %v392, 72
        %v904 = vpop.permute.xlu0 %903
        %905 = vrot.lane.b32.xlu0 %v382, 104
        %v906 = vpop.permute.xlu0 %905
        %v907 = vsel %vm396, %v904, 0
        %v909 = vsel %vm396, %v906, 0
        %911 = vmatprep.subr.mxu0 0.0
        %912 = vmatpush1.xpose.msra.mxu0 %v909
        %913 = vmatprep.subr.mxu0 0.0
        %914 = vmatpush1.xpose.msra.mxu0 0.0
        %915 = vmatprep.subr.mxu0 0.0
        %916 = vmatpush1.xpose.msra.mxu0 0.0
        %917 = vmatprep.subr.mxu0 0.0
        %918 = vmatpush1.xpose.msra.mxu0 0.0
        %919 = vmatprep.subr.mxu0 0.0
        %920 = vmatpush1.xpose.msra.mxu0 0.0
        %921 = vmatprep.subr.mxu0 0.0
        %922 = vmatpush1.xpose.msra.mxu0 0.0
        %923 = vmatprep.subr.mxu0 0.0
        %924 = vmatpush1.xpose.msra.mxu0 0.0
        %925 = vmatprep.subr.mxu0 0.0
        %926 = vmatpush1.xpose.msra.mxu0 0.0
        %927 = vmatprep.subr.mxu0 0.0
        %928 = vmatpush1.xpose.msra.mxu0 0.0
        %929 = vmatprep.subr.mxu0 0.0
        %930 = vmatpush1.xpose.msra.mxu0 0.0
        %931 = vmatprep.subr.mxu0 0.0
        %932 = vmatpush1.xpose.msra.mxu0 0.0
        %933 = vmatprep.subr.mxu0 0.0
        %934 = vmatpush1.xpose.msra.mxu0 0.0
        %935 = vmatprep.subr.mxu0 0.0
        %936 = vmatpush1.xpose.msra.mxu0 0.0
        %937 = vmatprep.subr.mxu0 0.0
        %938 = vmatpush1.xpose.msra.mxu0 0.0
        %939 = vmatprep.subr.mxu0 0.0
        %940 = vmatpush1.xpose.msra.mxu0 0.0
        %941 = vmatprep.subr.mxu0 0.0
        %942 = vmatpush1.xpose.msra.mxu0 0.0
        %943 = vmatprep.subr.mxu0 0.0
        %944 = vmatpush1.xpose.msra.mxu0 0.0
        %945 = vmatprep.subr.mxu0 0.0
        %946 = vmatpush1.xpose.msra.mxu0 0.0
        %947 = vmatprep.subr.mxu0 0.0
        %948 = vmatpush1.xpose.msra.mxu0 0.0
        %949 = vmatprep.subr.mxu0 0.0
        %950 = vmatpush1.xpose.msra.mxu0 0.0
        %951 = vmatprep.subr.mxu0 0.0
        %952 = vmatpush1.xpose.msra.mxu0 0.0
        %953 = vmatprep.subr.mxu0 0.0
        %954 = vmatpush1.xpose.msra.mxu0 0.0
        %955 = vmatprep.subr.mxu0 0.0
        %956 = vmatpush1.xpose.msra.mxu0 0.0
        %957 = vmatprep.subr.mxu0 0.0
        %958 = vmatpush1.xpose.msra.mxu0 0.0
        %959 = vmatprep.subr.mxu0 0.0
        %960 = vmatpush1.xpose.msra.mxu0 0.0
        %961 = vmatprep.subr.mxu0 0.0
        %962 = vmatpush1.xpose.msra.mxu0 0.0
        %963 = vmatprep.subr.mxu0 0.0
        %964 = vmatpush1.xpose.msra.mxu0 0.0
        %965 = vmatprep.subr.mxu0 0.0
        %966 = vmatpush1.xpose.msra.mxu0 0.0
        %967 = vmatprep.subr.mxu0 0.0
        %968 = vmatpush1.xpose.msra.mxu0 0.0
        %969 = vmatprep.subr.mxu0 0.0
        %970 = vmatpush1.xpose.msra.mxu0 0.0
        %971 = vmatprep.subr.mxu0 0.0
        %972 = vmatpush1.xpose.msra.mxu0 0.0
        %973 = vmatprep.subr.mxu0 0.0
        %974 = vmatpush1.xpose.msra.mxu0 0.0
        %975 = vmatprep.mubr.f32.mxu0 0.0
        %976 = vmatmul.mubr.f32.gmra.mrb[0].mxu0 %v907
        %v977 = vpop.f32.mrb[0].mxu0
        %v978 = vadd.f32 0.0, %v977
        %v979 = vpop.f32.mrb[0].mxu0
        %980 = vdwg.mxu0
        %v981 = vsel %vm396, %v978, -inf
        %982 = vmax.xlane.f32.xlu0 %v981
        %v983 = vpop.xlane.xlu0 %982
        %v984 = vsub.f32 %v978, %v983
        %v985 = vmul.f32 %v984, 1.442695
        %v986 = vpow.pop %v985
        %v987 = vsel %vm396, %v986, 0.0
        %988 = vadd.xlane.f32.xlu0 %v987
        %v989 = vpop.xlane.xlu0 %988
        %v990 = vrcp.pop %v989
        %v991 = vmul.f32 %v989, %v990
        %v992 = vsub.f32 2.0, %v991
        %v993 = vmul.f32 %v990, %v992
        %v994 = vmul.f32 %v986, %v993
        %s995 = scalar_lea.vmem %s284, 24 [#allocation9]
        %996 = vst.msk [vmem:[%s995] sm:$0xff] %vm396, %v994
        %997 = vrot.lane.b32.xlu0 %v382, 40
        %v998 = vpop.permute.xlu0 %997
        %v1001 = vsel %vm396, %v994, 0
        %1003 = vmatprep.subr.mxu0 0.0
        %1004 = vmatpush1.msra.mxu0 %v998
        %1005 = vmatprep.subr.mxu0 0.0
        %1006 = vmatpush1.msra.mxu0 0.0
        %1007 = vmatprep.subr.mxu0 0.0
        %1008 = vmatpush1.msra.mxu0 0.0
        %1009 = vmatprep.subr.mxu0 0.0
        %1010 = vmatpush1.msra.mxu0 0.0
        %1011 = vmatprep.subr.mxu0 0.0
        %1012 = vmatpush1.msra.mxu0 0.0
        %1013 = vmatprep.subr.mxu0 0.0
        %1014 = vmatpush1.msra.mxu0 0.0
        %1015 = vmatprep.subr.mxu0 0.0
        %1016 = vmatpush1.msra.mxu0 0.0
        %1017 = vmatprep.subr.mxu0 0.0
        %1018 = vmatpush1.msra.mxu0 0.0
        %1019 = vmatprep.subr.mxu0 0.0
        %1020 = vmatpush1.msra.mxu0 0.0
        %1021 = vmatprep.subr.mxu0 0.0
        %1022 = vmatpush1.msra.mxu0 0.0
        %1023 = vmatprep.subr.mxu0 0.0
        %1024 = vmatpush1.msra.mxu0 0.0
        %1025 = vmatprep.subr.mxu0 0.0
        %1026 = vmatpush1.msra.mxu0 0.0
        %1027 = vmatprep.subr.mxu0 0.0
        %1028 = vmatpush1.msra.mxu0 0.0
        %1029 = vmatprep.subr.mxu0 0.0
        %1030 = vmatpush1.msra.mxu0 0.0
        %1031 = vmatprep.subr.mxu0 0.0
        %1032 = vmatpush1.msra.mxu0 0.0
        %1033 = vmatprep.subr.mxu0 0.0
        %1034 = vmatpush1.msra.mxu0 0.0
        %1035 = vmatprep.subr.mxu0 0.0
        %1036 = vmatpush1.msra.mxu0 0.0
        %1037 = vmatprep.subr.mxu0 0.0
        %1038 = vmatpush1.msra.mxu0 0.0
        %1039 = vmatprep.subr.mxu0 0.0
        %1040 = vmatpush1.msra.mxu0 0.0
        %1041 = vmatprep.subr.mxu0 0.0
        %1042 = vmatpush1.msra.mxu0 0.0
        %1043 = vmatprep.subr.mxu0 0.0
        %1044 = vmatpush1.msra.mxu0 0.0
        %1045 = vmatprep.subr.mxu0 0.0
        %1046 = vmatpush1.msra.mxu0 0.0
        %1047 = vmatprep.subr.mxu0 0.0
        %1048 = vmatpush1.msra.mxu0 0.0
        %1049 = vmatprep.subr.mxu0 0.0
        %1050 = vmatpush1.msra.mxu0 0.0
        %1051 = vmatprep.subr.mxu0 0.0
        %1052 = vmatpush1.msra.mxu0 0.0
        %1053 = vmatprep.subr.mxu0 0.0
        %1054 = vmatpush1.msra.mxu0 0.0
        %1055 = vmatprep.subr.mxu0 0.0
        %1056 = vmatpush1.msra.mxu0 0.0
        %1057 = vmatprep.subr.mxu0 0.0
        %1058 = vmatpush1.msra.mxu0 0.0
        %1059 = vmatprep.subr.mxu0 0.0
        %1060 = vmatpush1.msra.mxu0 0.0
        %1061 = vmatprep.subr.mxu0 0.0
        %1062 = vmatpush1.msra.mxu0 0.0
        %1063 = vmatprep.subr.mxu0 0.0
        %1064 = vmatpush1.msra.mxu0 0.0
        %1065 = vmatprep.subr.mxu0 0.0
        %1066 = vmatpush1.msra.mxu0 0.0
        %1067 = vmatprep.mubr.f32.mxu0 0.0
        %1068 = vmatmul.mubr.f32.gmra.mrb[0].mxu0 %v1001
        %v1069 = vpop.f32.mrb[0].mxu0
        %v1070 = vadd.f32 0.0, %v1069
        %v1071 = vpop.f32.mrb[0].mxu0
        %1072 = vdwg.mxu0
        %1074 = vrot.lane.b32.xlu0 %v730, 8
        %v1075 = vpop.permute.xlu0 %1074
        %1078 = vrot.lane.b32.xlu0 %v900, 16
        %v1079 = vpop.permute.xlu0 %1078
        %1082 = vrot.lane.b32.xlu0 %v1070, 24
        %v1083 = vpop.permute.xlu0 %1082
        %v1085 = vsel %vm396, %v560, %v1075
        %vm1086 = vcmask 130048
        %v1087 = vsel %vm1086, %v1085, %v1079
        %vm1088 = vcmask 195584
        %v1089 = vsel %vm1088, %v1087, %v1083
        %vm1090 = vcmask 261120
        %1091 = vst.msk [vmem:[%s277] sm:$0xff] %vm1090, %v1089
        %s1092 = sand.u32 %s135, 1
        %s1093 = scalar_lea.sflag [#allocation5], %s1092
        %s1094 = sand.u32 %s135, 1
        %s1095 = smul.addr %s1094, 8
        %s1096 = scalar_lea.vmem [#allocation8], %s1095
        %s1097 = sand.u32 %s165, 1
        %s1098 = scalar_lea.sflag [#allocation10], %s1097
        %s1099 = sand.u32 %s165, 1
        %s1100 = smul.addr %s1099, 32
        %s1101 = scalar_lea.vmem [#allocation9], %s1100
        // Predicated region
        $region45: #{tpu_custom_call.1} parent=31 // pred_check
          %p1102 = pneg %p145
        $region46: #{tpu_custom_call.1} parent=31 // pred_check_branch
          %1104 = sbr.rel (%p1102) target = $region48
        $region47: #{tpu_custom_call.1} parent=31 // pred_region
          %s1106 = ssub.s32 128, 128
          %1107 = vsyncadd %s1093, %s1106
          %s1108 = sadd.s32 %s32, %s33
          %s1109 = sadd.s32 %s1108, %s31
          %s1110 = smul.addr %s1109, 128
          %s1111 = scalar_lea.hbm %s3, %s1110
          %s1113 = sshll.u32 %s1096, 4
          %s1114 = int_to_ptr.vmem [resolvable:$true] %s1113
          %1116 = dma.vmem_to_hbm [thread:$0]  %s1114, 128, %s1111, %s1093
        $region48: #{tpu_custom_call.1} parent=31 // pred_fallthru
          _
        // Predicated region
        $region49: #{tpu_custom_call.1} parent=31 // pred_check
          %p1117 = pneg %p175
        $region50: #{tpu_custom_call.1} parent=31 // pred_check_branch
          %1119 = sbr.rel (%p1117) target = $region52
        $region51: #{tpu_custom_call.1} parent=31 // pred_region
          %s1120 = smul.u32 4, %s32
          %s1122 = ssub.s32 512, 512
          %1123 = vsyncadd %s1098, %s1122
          %s1124 = sadd.s32 %s33, %s1120
          %s1125 = smul.addr %s31, 4
          %s1126 = sadd.s32 %s1124, %s1125
          %s1127 = smul.addr %s1126, 128
          %s1128 = scalar_lea.hbm %s4, %s1127
          %s1129 = sshll.u32 %s1101, 4
          %s1130 = int_to_ptr.vmem [resolvable:$true] %s1129
          %1135 = dma.vmem_to_hbm [thread:$0]  %s1130, 512, %s1128, %s1098, 128, 128, 8
        $region52: #{tpu_custom_call.1} parent=31 // pred_fallthru
          _
      $region32: #{tpu_custom_call.1} parent=5 // pred_fallthru
        _
      %p1136 = scmp.le.s32.totalorder 2, %s21
      // Predicated region
      $region53: #{tpu_custom_call.1} parent=5 // pred_check
        %p1137 = pneg %p1136
      $region54: #{tpu_custom_call.1} parent=5 // pred_check_branch
        %1139 = sbr.rel (%p1137) target = $region56
      $region55: #{tpu_custom_call.1} parent=5 // pred_region
        %s1140 = ssub.s32 %s21, 2
        // Predicated region
        $region57: #{tpu_custom_call.1} parent=55 // pred_check
          %p1141 = pneg %p151
        $region58: #{tpu_custom_call.1} parent=55 // pred_check_branch
          %1143 = sbr.rel (%p1141) target = $region60
        $region59: #{tpu_custom_call.1} parent=55 // pred_region
          %s1144 = sand.u32 %s136, 1
          %s1145 = scalar_lea.sflag [#allocation5], %s1144
          %s1146 = sand.u32 %s136, 1
          %s1147 = smul.addr %s1146, 8
          %s1148 = scalar_lea.vmem [#allocation8], %s1147
          %1149 = dma.done %s1145, 128
        $region60: #{tpu_custom_call.1} parent=55 // pred_fallthru
          _
        // Predicated region
        $region61: #{tpu_custom_call.1} parent=55 // pred_check
          %p1150 = pneg %p181
        $region62: #{tpu_custom_call.1} parent=55 // pred_check_branch
          %1152 = sbr.rel (%p1150) target = $region64
        $region63: #{tpu_custom_call.1} parent=55 // pred_region
          %s1153 = sand.u32 %s166, 1
          %s1154 = scalar_lea.sflag [#allocation10], %s1153
          %s1155 = sand.u32 %s166, 1
          %s1156 = smul.addr %s1155, 32
          %s1157 = scalar_lea.vmem [#allocation9], %s1156
          %1158 = dma.done %s1154, 512
        $region64: #{tpu_custom_call.1} parent=55 // pred_fallthru
          _
      $region56: #{tpu_custom_call.1} parent=5 // pred_fallthru
        _
    $region6: #{tpu_custom_call.1} parent=1 // loop_footer
      %s25 = sadd.s32 1, %s21
    $region7: #{tpu_custom_call.1} parent=1 // loop_footer_branch
      %20 = sbr.rel target = $region3
    $region8: #{tpu_custom_call.1} parent=1 // loop_exit
      _
    %1159 = vsyncpa [#allocation4], 1
    %s1160 = scalar_lea.sflag [#allocation4], 1
    %1161 = vsyncpa %s1160, 1
    %1162 = vsyncpa [#allocation7], 1
    %1163 = vsyncpa [#allocation5], 1
    %s1164 = scalar_lea.sflag [#allocation5], 1
    %1165 = vsyncpa %s1164, 1
    %1166 = vsyncpa [#allocation10], 1
    %s1167 = scalar_lea.sflag [#allocation10], 1
    %1168 = vsyncpa %s1167, 1

</llo_original>
